<compile_context>
chip_gen: v7x
topology: tpu7x:2x2x1
jax: 0.10.0
libtpu: 0.0.40
codegen_flags: <defaults>
</compile_context>

<pallas_src>
import jax
import jax.numpy as jnp
from jax.experimental import pallas as pl
from jax.experimental.pallas import tpu as pltpu


def _round_up(v, m):
    return (v + m - 1) // m * m


# --------------------------- fused BasicBlock Pallas kernel --------------------------- #
def _make_basic_block_kernel(n_blocks, Ho, Wo, Cin_eff, HID, Cout, taps1):
    """One fused kernel for the whole BasicBlock; one grid step = one image."""
    taps2 = [(dy, dx) for dy in range(3) for dx in range(3)]
    M = Ho * Wo

    def conv_relu(pieces, w_ref, b_ref):
        # fat-K: concat shifted-tap slices along channels -> one MXU dot (bf16 in, f32 acc).
        slab = jnp.concatenate(pieces, axis=-1) if len(pieces) > 1 else pieces[0]
        acc = jnp.dot(slab.astype(jnp.bfloat16), w_ref[...],
                      preferred_element_type=jnp.float32)
        return jnp.maximum(acc + b_ref[...], 0.0)          # folded-BN bias + ReLU

    def zero_halo(pad_ref, C):
        # Only the 1-px halo ring is zeroed; the interior is rewritten every block.
        pad_ref[0:1, :, :] = jnp.zeros((1, Wo + 2, C), jnp.float32)
        pad_ref[Ho + 1:Ho + 2, :, :] = jnp.zeros((1, Wo + 2, C), jnp.float32)
        pad_ref[1:Ho + 1, 0:1, :] = jnp.zeros((Ho, 1, C), jnp.float32)
        pad_ref[1:Ho + 1, Wo + 1:Wo + 2, :] = jnp.zeros((Ho, 1, C), jnp.float32)

    def tap_pieces(pad_ref, C):
        return [pad_ref[dy:dy + Ho, dx:dx + Wo, :].reshape(M, C) for dy, dx in taps2]

    def kernel(*refs):
        x_ref = refs[0]                      # (1, Hp, Wp, Cin_eff) bf16, halo-padded
        wrefs = refs[1:1 + 4 * n_blocks]     # per block: w1_fat, b1, w2_fat, b2
        o_ref = refs[1 + 4 * n_blocks]       # (1, Ho*Wo, Cout) f32
        h_pad = refs[2 + 4 * n_blocks]       # (Ho+2, Wo+2, HID)  f32 VMEM scratch
        a_pad = refs[3 + 4 * n_blocks]       # (Ho+2, Wo+2, Cout) f32 VMEM scratch

        zero_halo(h_pad, HID)
        if n_blocks > 1:
            zero_halo(a_pad, Cout)

        # block 0 / conv1 (2x2 taps over space-to-depth input if stride 2, else 3x3).
        x = x_ref[0]
        pieces = [x[dy:dy + Ho, dx:dx + Wo, :].reshape(M, Cin_eff) for dy, dx in taps1]
        h = conv_relu(pieces, wrefs[0], wrefs[1])

        a = None
        for i in range(n_blocks):
            if i > 0:   # block i / conv1 (3x3, stride 1) over previous block's output
                a_pad[1:Ho + 1, 1:Wo + 1, :] = a.reshape(Ho, Wo, Cout)
                h = conv_relu(tap_pieces(a_pad, Cout), wrefs[4 * i + 0], wrefs[4 * i + 1])
            # block i / conv2 (3x3, stride 1)
            h_pad[1:Ho + 1, 1:Wo + 1, :] = h.reshape(Ho, Wo, HID)
            a = conv_relu(tap_pieces(h_pad, HID), wrefs[4 * i + 2], wrefs[4 * i + 3])

        o_ref[...] = a.reshape(1, M, Cout).astype(o_ref.dtype)

    return kernel


def basic_block_forward(x_nchw, params):
    """Fused forward for the whole BasicBlock (list of per-VGGBlock params). NCHW in/out."""
    p0 = params[0]
    HID, Cout = p0["hid"], p0["out_ch"]
    for p in params[1:]:
        assert p["stride"] == 1 and p["hid"] == HID and p["out_ch"] == Cout

    # cast to bf16 BEFORE any layout glue (halves bytes moved by transpose/pad/s2d).
    x = jnp.transpose(x_nchw.astype(jnp.bfloat16), (0, 2, 3, 1))       # NCHW -> NHWC
    N, H, W, Cin = x.shape

    if p0["stride"] == 1:
        Ho, Wo, Cin_eff = H, W, Cin
        taps1 = [(dy, dx) for dy in range(3) for dx in range(3)]
        xp = jnp.pad(x, ((0, 0), (1, 1), (1, 1), (0, 0)))
    else:
        # 3x3/stride-2/pad-1 conv == 2x2/stride-1 conv over 2x2 pixel groups (4*Cin ch),
        # with a zero halo on top/left only.
        assert H % 2 == 0 and W % 2 == 0
        Ho, Wo, Cin_eff = H // 2, W // 2, 4 * Cin
        s2d = x.reshape(N, H // 2, 2, W // 2, 2, Cin).transpose(0, 1, 3, 2, 4, 5)
        xp = jnp.pad(s2d.reshape(N, Ho, Wo, Cin_eff), ((0, 0), (1, 0), (1, 0), (0, 0)))
        taps1 = [(da, db) for da in range(2) for db in range(2)]
    Hp, Wp = xp.shape[1], xp.shape[2]
    nb = len(params)

    kernel = _make_basic_block_kernel(nb, Ho, Wo, Cin_eff, HID, Cout, taps1)

    weight_args = []
    in_specs = [pl.BlockSpec((1, Hp, Wp, Cin_eff), lambda n: (n, 0, 0, 0))]
    for p in params:
        for name in ("w1_fat", "b1", "w2_fat", "b2"):
            arr = p[name]
            weight_args.append(arr)
            in_specs.append(pl.BlockSpec(arr.shape, lambda n: (0, 0)))   # resident weights

    out = pl.pallas_call(
        kernel,
        out_shape=jax.ShapeDtypeStruct((N, Ho * Wo, Cout), jnp.float32),
        grid_spec=pltpu.PrefetchScalarGridSpec(
            num_scalar_prefetch=0,
            grid=(N,),                              # >= 2 parallel steps -> both v7x TCs
            in_specs=in_specs,
            out_specs=pl.BlockSpec((1, Ho * Wo, Cout), lambda n: (n, 0, 0)),
            scratch_shapes=[pltpu.VMEM((Ho + 2, Wo + 2, HID), jnp.float32),
                            pltpu.VMEM((Ho + 2, Wo + 2, Cout), jnp.float32)],
        ),
        compiler_params=pltpu.CompilerParams(
            dimension_semantics=("parallel",),
            vmem_limit_bytes=32 * 1024 * 1024,
        ),
    )(xp, *weight_args)

    out = out.reshape(N, Ho, Wo, Cout)
    return jnp.transpose(out, (0, 3, 1, 2))          # NHWC -> NCHW


# ------------------------------- parameters / glue -------------------------------- #
def _make_vgg_block_params(key, in_ch, out_ch, d, C):
    base_width = 16
    hidden = d * (out_ch // base_width) * C
    stride = 1 if in_ch == out_ch else 2
    k1, k2 = jax.random.split(key)
    # kaiming_normal_ (fan_in mode): std = sqrt(2 / (9 * Cin))
    w1 = jax.random.normal(k1, (3, 3, in_ch, hidden), jnp.float32) * jnp.sqrt(2.0 / (9 * in_ch))
    w2 = jax.random.normal(k2, (3, 3, hidden, out_ch), jnp.float32) * jnp.sqrt(2.0 / (9 * hidden))
    # BatchNorm2d default init, eval mode: gamma=1, beta=0, mean=0, var=1, eps=1e-5.
    eps = 1e-5
    s1 = jnp.full((hidden,), 1.0 / jnp.sqrt(1.0 + eps), jnp.float32)
    b1 = jnp.zeros((hidden,), jnp.float32)
    s2 = jnp.full((out_ch,), 1.0 / jnp.sqrt(1.0 + eps), jnp.float32)
    b2 = jnp.zeros((out_ch,), jnp.float32)

    # fold BN scales into the conv weights (kernel epilogue = bias + relu only).
    w1f = w1 * s1[None, None, None, :]
    w2f = w2 * s2[None, None, None, :]

    # zero-pad hidden channels to a multiple of 8 (exact: padded channels contribute 0).
    HID = _round_up(max(hidden, 8), 8)
    w1f = jnp.pad(w1f, ((0, 0), (0, 0), (0, 0), (0, HID - hidden)))
    b1p = jnp.pad(b1, (0, HID - hidden))
    w2f = jnp.pad(w2f, ((0, 0), (0, 0), (0, HID - hidden), (0, 0)))

    # fat-K weight layouts matching the in-kernel tap-major channel concatenation.
    w2_fat = w2f.reshape(9 * HID, out_ch).astype(jnp.bfloat16)
    if stride == 1:
        w1_fat = w1f.reshape(9 * in_ch, HID).astype(jnp.bfloat16)
    else:
        # rearrange the 3x3 stride-2 kernel into 2x2 taps over the space-to-depth input:
        # tap (da, db), channel group (p, q) <-> original tap (dy, dx) = (2da+p-1, 2db+q-1).
        w1t = jnp.zeros((4, 4 * in_ch, HID), jnp.float32)
        for da in range(2):
            for db in range(2):
                for pp in range(2):
                    for q in range(2):
                        dy, dx = 2 * da + pp - 1, 2 * db + q - 1
                        if 0 <= dy < 3 and 0 <= dx < 3:
                            g = pp * 2 + q
                            w1t = w1t.at[da * 2 + db, g * in_ch:(g + 1) * in_ch, :].set(w1f[dy, dx])
        w1_fat = w1t.reshape(4 * 4 * in_ch, HID).astype(jnp.bfloat16)

    return dict(
        stride=stride, in_ch=in_ch, out_ch=out_ch, hid=HID,
        w1_fat=w1_fat, b1=b1p.reshape(1, HID),
        w2_fat=w2_fat, b2=b2.reshape(1, out_ch),
        # raw (unfolded / unpadded) params for the pure-JAX reference
        ref=dict(w1=w1, s1=s1, b1=b1, w2=w2, s2=s2, b2=b2, stride=stride),
    )


def make_basic_block_params(key, in_channels, out_channels, d, C, n):
    keys = jax.random.split(key, n)
    params = []
    for i in range(n):
        ic = in_channels if i == 0 else out_channels
        params.append(_make_vgg_block_params(keys[i], ic, out_channels, d, C))
    return params


# ------------------------------ pure-JAX reference --------------------------------- #
def _conv3x3_ref(x_nhwc, w_hwio, stride):
    return jax.lax.conv_general_dilated(
        x_nhwc, w_hwio, window_strides=(stride, stride), padding=((1, 1), (1, 1)),
        dimension_numbers=("NHWC", "HWIO", "NHWC"), precision=jax.lax.Precision.HIGHEST)


def basic_block_reference(x_nchw, params):
    x = jnp.transpose(x_nchw, (0, 2, 3, 1))
    for p in params:
        r = p["ref"]
        h = _conv3x3_ref(x, r["w1"], r["stride"])
        h = jnp.maximum(h * r["s1"] + r["b1"], 0.0)
        o = _conv3x3_ref(h, r["w2"], 1)
        x = jnp.maximum(o * r["s2"] + r["b2"], 0.0)
    return jnp.transpose(x, (0, 3, 1, 2))


# --------------------------------------- main -------------------------------------- #
if __name__ == "__main__":
    key = jax.random.PRNGKey(0)
    kx, kp = jax.random.split(key)

    # BasicBlock(in_channels=8, out_channels=16, d=2, C=2, n=2, bottleneck=False)
    in_channels, out_channels, d, C, n = 8, 16, 2, 2, 2
    N, H, W = 2, 16, 16

    x = jax.random.normal(kx, (N, in_channels, H, W), jnp.float32)    # NCHW like PyTorch
    params = make_basic_block_params(kp, in_channels, out_channels, d, C, n)

    fwd = jax.jit(lambda xx: basic_block_forward(xx, params))
    out = jax.block_until_ready(fwd(x))

    # block0 has stride 2 (in_ch != out_ch): 16x16 -> 8x8; block1 stride 1.
    assert out.shape == (N, out_channels, H // 2, W // 2), out.shape
    assert bool(jnp.all(out >= 0.0))                                   # final ReLU

    # numerical check vs. f32 reference (bf16 MXU operands -> loose tolerance).
    ref = basic_block_reference(x, params)
    max_ref = float(jnp.max(jnp.abs(ref)))
    max_err = float(jnp.max(jnp.abs(out - ref)))
    assert max_err <= 0.1 * max_ref + 0.1, (max_err, max_ref)

    print("KERNEL_OK")
</pallas_src>

<mosaic_0001>
module attributes {stable_mosaic.version = 11 : i64} {
  func.func @kernel(%arg0: i32, %arg1: memref<1x9x9x32xbf16, #tpu.memory_space<vmem>>, %arg2: memref<128x8xbf16, #tpu.memory_space<vmem>>, %arg3: memref<1x8xf32, #tpu.memory_space<vmem>>, %arg4: memref<72x16xbf16, #tpu.memory_space<vmem>>, %arg5: memref<1x16xf32, #tpu.memory_space<vmem>>, %arg6: memref<144x8xbf16, #tpu.memory_space<vmem>>, %arg7: memref<1x8xf32, #tpu.memory_space<vmem>>, %arg8: memref<72x16xbf16, #tpu.memory_space<vmem>>, %arg9: memref<1x16xf32, #tpu.memory_space<vmem>>, %arg10: memref<1x64x16xf32, #tpu.memory_space<vmem>>, %arg11: memref<10x10x8xf32, #tpu.memory_space<vmem>>, %arg12: memref<10x10x16xf32, #tpu.memory_space<vmem>>) attributes {dimension_semantics = [#tpu.dimension_semantics<parallel>], iteration_bounds = array<i64: 2>, scalar_prefetch = 0 : i64, scratch_operands = 2 : i64, tpu.core_type = #tpu.core_type<tc>, window_params = [{transform_indices = @transform_0, window_bounds = array<i64: 1, 9, 9, 32>}, {pipeline_mode = #tpu.pipeline_mode<synchronous>, transform_indices = @transform_1, window_bounds = array<i64: 128, 8>}, {pipeline_mode = #tpu.pipeline_mode<synchronous>, transform_indices = @transform_2, window_bounds = array<i64: 1, 8>}, {pipeline_mode = #tpu.pipeline_mode<synchronous>, transform_indices = @transform_3, window_bounds = array<i64: 72, 16>}, {pipeline_mode = #tpu.pipeline_mode<synchronous>, transform_indices = @transform_4, window_bounds = array<i64: 1, 16>}, {pipeline_mode = #tpu.pipeline_mode<synchronous>, transform_indices = @transform_5, window_bounds = array<i64: 144, 8>}, {pipeline_mode = #tpu.pipeline_mode<synchronous>, transform_indices = @transform_6, window_bounds = array<i64: 1, 8>}, {pipeline_mode = #tpu.pipeline_mode<synchronous>, transform_indices = @transform_7, window_bounds = array<i64: 72, 16>}, {pipeline_mode = #tpu.pipeline_mode<synchronous>, transform_indices = @transform_8, window_bounds = array<i64: 1, 16>}, {transform_indices = @transform_9, window_bounds = array<i64: 1, 64, 16>}]} {
    %cst = arith.constant 0.000000e+00 : f32
    %0 = vector.broadcast %cst : f32 to vector<1x10x8xf32>
    %c0 = arith.constant 0 : index
    %c0_0 = arith.constant 0 : index
    %c0_1 = arith.constant 0 : index
    %1 = vector.load %arg11[%c0, %c0_0, %c0_1] : memref<10x10x8xf32, #tpu.memory_space<vmem>>, vector<1x10x8xf32>
    tpu.vector_store %arg11[%c0, %c0_0, %c0_1], %0 {strides = array<i32>} : memref<10x10x8xf32, #tpu.memory_space<vmem>>, vector<1x10x8xf32>,
    %cst_2 = arith.constant 0.000000e+00 : f32
    %2 = vector.broadcast %cst_2 : f32 to vector<1x10x8xf32>
    %c9 = arith.constant 9 : index
    %c0_3 = arith.constant 0 : index
    %c0_4 = arith.constant 0 : index
    %3 = vector.load %arg11[%c9, %c0_3, %c0_4] : memref<10x10x8xf32, #tpu.memory_space<vmem>>, vector<1x10x8xf32>
    tpu.vector_store %arg11[%c9, %c0_3, %c0_4], %2 {strides = array<i32>} : memref<10x10x8xf32, #tpu.memory_space<vmem>>, vector<1x10x8xf32>,
    %cst_5 = arith.constant 0.000000e+00 : f32
    %4 = vector.broadcast %cst_5 : f32 to vector<8x1x8xf32>
    %c1 = arith.constant 1 : index
    %c0_6 = arith.constant 0 : index
    %c0_7 = arith.constant 0 : index
    %5 = vector.load %arg11[%c1, %c0_6, %c0_7] : memref<10x10x8xf32, #tpu.memory_space<vmem>>, vector<8x1x8xf32>
    tpu.vector_store %arg11[%c1, %c0_6, %c0_7], %4 {strides = array<i32>} : memref<10x10x8xf32, #tpu.memory_space<vmem>>, vector<8x1x8xf32>,
    %cst_8 = arith.constant 0.000000e+00 : f32
    %6 = vector.broadcast %cst_8 : f32 to vector<8x1x8xf32>
    %c1_9 = arith.constant 1 : index
    %c9_10 = arith.constant 9 : index
    %c0_11 = arith.constant 0 : index
    %7 = vector.load %arg11[%c1_9, %c9_10, %c0_11] : memref<10x10x8xf32, #tpu.memory_space<vmem>>, vector<8x1x8xf32>
    tpu.vector_store %arg11[%c1_9, %c9_10, %c0_11], %6 {strides = array<i32>} : memref<10x10x8xf32, #tpu.memory_space<vmem>>, vector<8x1x8xf32>,
    %cst_12 = arith.constant 0.000000e+00 : f32
    %8 = vector.broadcast %cst_12 : f32 to vector<1x10x16xf32>
    %c0_13 = arith.constant 0 : index
    %c0_14 = arith.constant 0 : index
    %c0_15 = arith.constant 0 : index
    %9 = vector.load %arg12[%c0_13, %c0_14, %c0_15] : memref<10x10x16xf32, #tpu.memory_space<vmem>>, vector<1x10x16xf32>
    tpu.vector_store %arg12[%c0_13, %c0_14, %c0_15], %8 {strides = array<i32>} : memref<10x10x16xf32, #tpu.memory_space<vmem>>, vector<1x10x16xf32>,
    %cst_16 = arith.constant 0.000000e+00 : f32
    %10 = vector.broadcast %cst_16 : f32 to vector<1x10x16xf32>
    %c9_17 = arith.constant 9 : index
    %c0_18 = arith.constant 0 : index
    %c0_19 = arith.constant 0 : index
    %11 = vector.load %arg12[%c9_17, %c0_18, %c0_19] : memref<10x10x16xf32, #tpu.memory_space<vmem>>, vector<1x10x16xf32>
    tpu.vector_store %arg12[%c9_17, %c0_18, %c0_19], %10 {strides = array<i32>} : memref<10x10x16xf32, #tpu.memory_space<vmem>>, vector<1x10x16xf32>,
    %cst_20 = arith.constant 0.000000e+00 : f32
    %12 = vector.broadcast %cst_20 : f32 to vector<8x1x16xf32>
    %c1_21 = arith.constant 1 : index
    %c0_22 = arith.constant 0 : index
    %c0_23 = arith.constant 0 : index
    %13 = vector.load %arg12[%c1_21, %c0_22, %c0_23] : memref<10x10x16xf32, #tpu.memory_space<vmem>>, vector<8x1x16xf32>
    tpu.vector_store %arg12[%c1_21, %c0_22, %c0_23], %12 {strides = array<i32>} : memref<10x10x16xf32, #tpu.memory_space<vmem>>, vector<8x1x16xf32>,
    %cst_24 = arith.constant 0.000000e+00 : f32
    %14 = vector.broadcast %cst_24 : f32 to vector<8x1x16xf32>
    %c1_25 = arith.constant 1 : index
    %c9_26 = arith.constant 9 : index
    %c0_27 = arith.constant 0 : index
    %15 = vector.load %arg12[%c1_25, %c9_26, %c0_27] : memref<10x10x16xf32, #tpu.memory_space<vmem>>, vector<8x1x16xf32>
    tpu.vector_store %arg12[%c1_25, %c9_26, %c0_27], %14 {strides = array<i32>} : memref<10x10x16xf32, #tpu.memory_space<vmem>>, vector<8x1x16xf32>,
    %c0_28 = arith.constant 0 : index
    %c0_29 = arith.constant 0 : index
    %c0_30 = arith.constant 0 : index
    %c0_31 = arith.constant 0 : index
    %16 = vector.load %arg1[%c0_28, %c0_29, %c0_30, %c0_31] : memref<1x9x9x32xbf16, #tpu.memory_space<vmem>>, vector<1x9x9x32xbf16>
    %17 = vector.shape_cast %16 : vector<1x9x9x32xbf16> to vector<9x9x32xbf16>
    %18 = vector.extract_strided_slice %17 {offsets = [0, 0, 0], sizes = [8, 8, 32], strides = [1, 1, 1]} : vector<9x9x32xbf16> to vector<8x8x32xbf16>
    %19 = vector.shape_cast %18 : vector<8x8x32xbf16> to vector<64x32xbf16>
    %20 = vector.extract_strided_slice %17 {offsets = [0, 1, 0], sizes = [8, 8, 32], strides = [1, 1, 1]} : vector<9x9x32xbf16> to vector<8x8x32xbf16>
    %21 = vector.shape_cast %20 : vector<8x8x32xbf16> to vector<64x32xbf16>
    %22 = vector.extract_strided_slice %17 {offsets = [1, 0, 0], sizes = [8, 8, 32], strides = [1, 1, 1]} : vector<9x9x32xbf16> to vector<8x8x32xbf16>
    %23 = vector.shape_cast %22 : vector<8x8x32xbf16> to vector<64x32xbf16>
    %24 = vector.extract_strided_slice %17 {offsets = [1, 1, 0], sizes = [8, 8, 32], strides = [1, 1, 1]} : vector<9x9x32xbf16> to vector<8x8x32xbf16>
    %25 = vector.shape_cast %24 : vector<8x8x32xbf16> to vector<64x32xbf16>
    %26 = tpu.concatenate %19, %21, %23, %25 in 1 : vector<64x32xbf16>, vector<64x32xbf16>, vector<64x32xbf16>, vector<64x32xbf16> -> vector<64x128xbf16>
    %c0_32 = arith.constant 0 : index
    %c0_33 = arith.constant 0 : index
    %27 = vector.load %arg2[%c0_32, %c0_33] : memref<128x8xbf16, #tpu.memory_space<vmem>>, vector<128x8xbf16>
    %cst_34 = arith.constant dense<0.000000e+00> : vector<64x8xf32>
    %28 = tpu.matmul %26, %27, %cst_34 {dimension_numbers = #tpu.dot_dimension_numbers<[1], [0], [0], [1], [0, 0, 1, 1], [], []>} : vector<64x128xbf16>, vector<128x8xbf16>, vector<64x8xf32> -> vector<64x8xf32>
    %c0_35 = arith.constant 0 : index
    %c0_36 = arith.constant 0 : index
    %29 = vector.load %arg3[%c0_35, %c0_36] : memref<1x8xf32, #tpu.memory_space<vmem>>, vector<1x8xf32>
    %30 = vector.broadcast %29 : vector<1x8xf32> to vector<64x8xf32>
    %31 = arith.addf %28, %30 : vector<64x8xf32>
    %cst_37 = arith.constant 0.000000e+00 : f32
    %32 = vector.broadcast %cst_37 : f32 to vector<64x8xf32>
    %33 = arith.maximumf %31, %32 : vector<64x8xf32>
    %34 = vector.shape_cast %33 : vector<64x8xf32> to vector<8x8x8xf32>
    %c1_38 = arith.constant 1 : index
    %c1_39 = arith.constant 1 : index
    %c0_40 = arith.constant 0 : index
    %35 = vector.load %arg11[%c1_38, %c1_39, %c0_40] : memref<10x10x8xf32, #tpu.memory_space<vmem>>, vector<8x8x8xf32>
    tpu.vector_store %arg11[%c1_38, %c1_39, %c0_40], %34 {strides = array<i32>} : memref<10x10x8xf32, #tpu.memory_space<vmem>>, vector<8x8x8xf32>,
    %c0_41 = arith.constant 0 : index
    %c0_42 = arith.constant 0 : index
    %c0_43 = arith.constant 0 : index
    %36 = vector.load %arg11[%c0_41, %c0_42, %c0_43] : memref<10x10x8xf32, #tpu.memory_space<vmem>>, vector<8x8x8xf32>
    %37 = vector.shape_cast %36 : vector<8x8x8xf32> to vector<64x8xf32>
    %c0_44 = arith.constant 0 : index
    %c1_45 = arith.constant 1 : index
    %c0_46 = arith.constant 0 : index
    %38 = vector.load %arg11[%c0_44, %c1_45, %c0_46] : memref<10x10x8xf32, #tpu.memory_space<vmem>>, vector<8x8x8xf32>
    %39 = vector.shape_cast %38 : vector<8x8x8xf32> to vector<64x8xf32>
    %c0_47 = arith.constant 0 : index
    %c2 = arith.constant 2 : index
    %c0_48 = arith.constant 0 : index
    %40 = vector.load %arg11[%c0_47, %c2, %c0_48] : memref<10x10x8xf32, #tpu.memory_space<vmem>>, vector<8x8x8xf32>
    %41 = vector.shape_cast %40 : vector<8x8x8xf32> to vector<64x8xf32>
    %c1_49 = arith.constant 1 : index
    %c0_50 = arith.constant 0 : index
    %c0_51 = arith.constant 0 : index
    %42 = vector.load %arg11[%c1_49, %c0_50, %c0_51] : memref<10x10x8xf32, #tpu.memory_space<vmem>>, vector<8x8x8xf32>
    %43 = vector.shape_cast %42 : vector<8x8x8xf32> to vector<64x8xf32>
    %c1_52 = arith.constant 1 : index
    %c1_53 = arith.constant 1 : index
    %c0_54 = arith.constant 0 : index
    %44 = vector.load %arg11[%c1_52, %c1_53, %c0_54] : memref<10x10x8xf32, #tpu.memory_space<vmem>>, vector<8x8x8xf32>
    %45 = vector.shape_cast %44 : vector<8x8x8xf32> to vector<64x8xf32>
    %c1_55 = arith.constant 1 : index
    %c2_56 = arith.constant 2 : index
    %c0_57 = arith.constant 0 : index
    %46 = vector.load %arg11[%c1_55, %c2_56, %c0_57] : memref<10x10x8xf32, #tpu.memory_space<vmem>>, vector<8x8x8xf32>
    %47 = vector.shape_cast %46 : vector<8x8x8xf32> to vector<64x8xf32>
    %c2_58 = arith.constant 2 : index
    %c0_59 = arith.constant 0 : index
    %c0_60 = arith.constant 0 : index
    %48 = vector.load %arg11[%c2_58, %c0_59, %c0_60] : memref<10x10x8xf32, #tpu.memory_space<vmem>>, vector<8x8x8xf32>
    %49 = vector.shape_cast %48 : vector<8x8x8xf32> to vector<64x8xf32>
    %c2_61 = arith.constant 2 : index
    %c1_62 = arith.constant 1 : index
    %c0_63 = arith.constant 0 : index
    %50 = vector.load %arg11[%c2_61, %c1_62, %c0_63] : memref<10x10x8xf32, #tpu.memory_space<vmem>>, vector<8x8x8xf32>
    %51 = vector.shape_cast %50 : vector<8x8x8xf32> to vector<64x8xf32>
    %c2_64 = arith.constant 2 : index
    %c2_65 = arith.constant 2 : index
    %c0_66 = arith.constant 0 : index
    %52 = vector.load %arg11[%c2_64, %c2_65, %c0_66] : memref<10x10x8xf32, #tpu.memory_space<vmem>>, vector<8x8x8xf32>
    %53 = vector.shape_cast %52 : vector<8x8x8xf32> to vector<64x8xf32>
    %54 = tpu.concatenate %37, %39, %41, %43, %45, %47, %49, %51, %53 in 1 : vector<64x8xf32>, vector<64x8xf32>, vector<64x8xf32>, vector<64x8xf32>, vector<64x8xf32>, vector<64x8xf32>, vector<64x8xf32>, vector<64x8xf32>, vector<64x8xf32> -> vector<64x72xf32>
    %55 = arith.truncf %54 : vector<64x72xf32> to vector<64x72xbf16>
    %c0_67 = arith.constant 0 : index
    %c0_68 = arith.constant 0 : index
    %56 = vector.load %arg4[%c0_67, %c0_68] : memref<72x16xbf16, #tpu.memory_space<vmem>>, vector<72x16xbf16>
    %cst_69 = arith.constant dense<0.000000e+00> : vector<64x16xf32>
    %57 = tpu.matmul %55, %56, %cst_69 {dimension_numbers = #tpu.dot_dimension_numbers<[1], [0], [0], [1], [0, 0, 1, 1], [], []>} : vector<64x72xbf16>, vector<72x16xbf16>, vector<64x16xf32> -> vector<64x16xf32>
    %c0_70 = arith.constant 0 : index
    %c0_71 = arith.constant 0 : index
    %58 = vector.load %arg5[%c0_70, %c0_71] : memref<1x16xf32, #tpu.memory_space<vmem>>, vector<1x16xf32>
    %59 = vector.broadcast %58 : vector<1x16xf32> to vector<64x16xf32>
    %60 = arith.addf %57, %59 : vector<64x16xf32>
    %cst_72 = arith.constant 0.000000e+00 : f32
    %61 = vector.broadcast %cst_72 : f32 to vector<64x16xf32>
    %62 = arith.maximumf %60, %61 : vector<64x16xf32>
    %63 = vector.shape_cast %62 : vector<64x16xf32> to vector<8x8x16xf32>
    %c1_73 = arith.constant 1 : index
    %c1_74 = arith.constant 1 : index
    %c0_75 = arith.constant 0 : index
    %64 = vector.load %arg12[%c1_73, %c1_74, %c0_75] : memref<10x10x16xf32, #tpu.memory_space<vmem>>, vector<8x8x16xf32>
    tpu.vector_store %arg12[%c1_73, %c1_74, %c0_75], %63 {strides = array<i32>} : memref<10x10x16xf32, #tpu.memory_space<vmem>>, vector<8x8x16xf32>,
    %c0_76 = arith.constant 0 : index
    %c0_77 = arith.constant 0 : index
    %c0_78 = arith.constant 0 : index
    %65 = vector.load %arg12[%c0_76, %c0_77, %c0_78] : memref<10x10x16xf32, #tpu.memory_space<vmem>>, vector<8x8x16xf32>
    %66 = vector.shape_cast %65 : vector<8x8x16xf32> to vector<64x16xf32>
    %c0_79 = arith.constant 0 : index
    %c1_80 = arith.constant 1 : index
    %c0_81 = arith.constant 0 : index
    %67 = vector.load %arg12[%c0_79, %c1_80, %c0_81] : memref<10x10x16xf32, #tpu.memory_space<vmem>>, vector<8x8x16xf32>
    %68 = vector.shape_cast %67 : vector<8x8x16xf32> to vector<64x16xf32>
    %c0_82 = arith.constant 0 : index
    %c2_83 = arith.constant 2 : index
    %c0_84 = arith.constant 0 : index
    %69 = vector.load %arg12[%c0_82, %c2_83, %c0_84] : memref<10x10x16xf32, #tpu.memory_space<vmem>>, vector<8x8x16xf32>
    %70 = vector.shape_cast %69 : vector<8x8x16xf32> to vector<64x16xf32>
    %c1_85 = arith.constant 1 : index
    %c0_86 = arith.constant 0 : index
    %c0_87 = arith.constant 0 : index
    %71 = vector.load %arg12[%c1_85, %c0_86, %c0_87] : memref<10x10x16xf32, #tpu.memory_space<vmem>>, vector<8x8x16xf32>
    %72 = vector.shape_cast %71 : vector<8x8x16xf32> to vector<64x16xf32>
    %c1_88 = arith.constant 1 : index
    %c1_89 = arith.constant 1 : index
    %c0_90 = arith.constant 0 : index
    %73 = vector.load %arg12[%c1_88, %c1_89, %c0_90] : memref<10x10x16xf32, #tpu.memory_space<vmem>>, vector<8x8x16xf32>
    %74 = vector.shape_cast %73 : vector<8x8x16xf32> to vector<64x16xf32>
    %c1_91 = arith.constant 1 : index
    %c2_92 = arith.constant 2 : index
    %c0_93 = arith.constant 0 : index
    %75 = vector.load %arg12[%c1_91, %c2_92, %c0_93] : memref<10x10x16xf32, #tpu.memory_space<vmem>>, vector<8x8x16xf32>
    %76 = vector.shape_cast %75 : vector<8x8x16xf32> to vector<64x16xf32>
    %c2_94 = arith.constant 2 : index
    %c0_95 = arith.constant 0 : index
    %c0_96 = arith.constant 0 : index
    %77 = vector.load %arg12[%c2_94, %c0_95, %c0_96] : memref<10x10x16xf32, #tpu.memory_space<vmem>>, vector<8x8x16xf32>
    %78 = vector.shape_cast %77 : vector<8x8x16xf32> to vector<64x16xf32>
    %c2_97 = arith.constant 2 : index
    %c1_98 = arith.constant 1 : index
    %c0_99 = arith.constant 0 : index
    %79 = vector.load %arg12[%c2_97, %c1_98, %c0_99] : memref<10x10x16xf32, #tpu.memory_space<vmem>>, vector<8x8x16xf32>
    %80 = vector.shape_cast %79 : vector<8x8x16xf32> to vector<64x16xf32>
    %c2_100 = arith.constant 2 : index
    %c2_101 = arith.constant 2 : index
    %c0_102 = arith.constant 0 : index
    %81 = vector.load %arg12[%c2_100, %c2_101, %c0_102] : memref<10x10x16xf32, #tpu.memory_space<vmem>>, vector<8x8x16xf32>
    %82 = vector.shape_cast %81 : vector<8x8x16xf32> to vector<64x16xf32>
    %83 = tpu.concatenate %66, %68, %70, %72, %74, %76, %78, %80, %82 in 1 : vector<64x16xf32>, vector<64x16xf32>, vector<64x16xf32>, vector<64x16xf32>, vector<64x16xf32>, vector<64x16xf32>, vector<64x16xf32>, vector<64x16xf32>, vector<64x16xf32> -> vector<64x144xf32>
    %84 = arith.truncf %83 : vector<64x144xf32> to vector<64x144xbf16>
    %c0_103 = arith.constant 0 : index
    %c0_104 = arith.constant 0 : index
    %85 = vector.load %arg6[%c0_103, %c0_104] : memref<144x8xbf16, #tpu.memory_space<vmem>>, vector<144x8xbf16>
    %cst_105 = arith.constant dense<0.000000e+00> : vector<64x8xf32>
    %86 = tpu.matmul %84, %85, %cst_105 {dimension_numbers = #tpu.dot_dimension_numbers<[1], [0], [0], [1], [0, 0, 1, 1], [], []>} : vector<64x144xbf16>, vector<144x8xbf16>, vector<64x8xf32> -> vector<64x8xf32>
    %c0_106 = arith.constant 0 : index
    %c0_107 = arith.constant 0 : index
    %87 = vector.load %arg7[%c0_106, %c0_107] : memref<1x8xf32, #tpu.memory_space<vmem>>, vector<1x8xf32>
    %88 = vector.broadcast %87 : vector<1x8xf32> to vector<64x8xf32>
    %89 = arith.addf %86, %88 : vector<64x8xf32>
    %cst_108 = arith.constant 0.000000e+00 : f32
    %90 = vector.broadcast %cst_108 : f32 to vector<64x8xf32>
    %91 = arith.maximumf %89, %90 : vector<64x8xf32>
    %92 = vector.shape_cast %91 : vector<64x8xf32> to vector<8x8x8xf32>
    %c1_109 = arith.constant 1 : index
    %c1_110 = arith.constant 1 : index
    %c0_111 = arith.constant 0 : index
    %93 = vector.load %arg11[%c1_109, %c1_110, %c0_111] : memref<10x10x8xf32, #tpu.memory_space<vmem>>, vector<8x8x8xf32>
    tpu.vector_store %arg11[%c1_109, %c1_110, %c0_111], %92 {strides = array<i32>} : memref<10x10x8xf32, #tpu.memory_space<vmem>>, vector<8x8x8xf32>,
    %c0_112 = arith.constant 0 : index
    %c0_113 = arith.constant 0 : index
    %c0_114 = arith.constant 0 : index
    %94 = vector.load %arg11[%c0_112, %c0_113, %c0_114] : memref<10x10x8xf32, #tpu.memory_space<vmem>>, vector<8x8x8xf32>
    %95 = vector.shape_cast %94 : vector<8x8x8xf32> to vector<64x8xf32>
    %c0_115 = arith.constant 0 : index
    %c1_116 = arith.constant 1 : index
    %c0_117 = arith.constant 0 : index
    %96 = vector.load %arg11[%c0_115, %c1_116, %c0_117] : memref<10x10x8xf32, #tpu.memory_space<vmem>>, vector<8x8x8xf32>
    %97 = vector.shape_cast %96 : vector<8x8x8xf32> to vector<64x8xf32>
    %c0_118 = arith.constant 0 : index
    %c2_119 = arith.constant 2 : index
    %c0_120 = arith.constant 0 : index
    %98 = vector.load %arg11[%c0_118, %c2_119, %c0_120] : memref<10x10x8xf32, #tpu.memory_space<vmem>>, vector<8x8x8xf32>
    %99 = vector.shape_cast %98 : vector<8x8x8xf32> to vector<64x8xf32>
    %c1_121 = arith.constant 1 : index
    %c0_122 = arith.constant 0 : index
    %c0_123 = arith.constant 0 : index
    %100 = vector.load %arg11[%c1_121, %c0_122, %c0_123] : memref<10x10x8xf32, #tpu.memory_space<vmem>>, vector<8x8x8xf32>
    %101 = vector.shape_cast %100 : vector<8x8x8xf32> to vector<64x8xf32>
    %c1_124 = arith.constant 1 : index
    %c1_125 = arith.constant 1 : index
    %c0_126 = arith.constant 0 : index
    %102 = vector.load %arg11[%c1_124, %c1_125, %c0_126] : memref<10x10x8xf32, #tpu.memory_space<vmem>>, vector<8x8x8xf32>
    %103 = vector.shape_cast %102 : vector<8x8x8xf32> to vector<64x8xf32>
    %c1_127 = arith.constant 1 : index
    %c2_128 = arith.constant 2 : index
    %c0_129 = arith.constant 0 : index
    %104 = vector.load %arg11[%c1_127, %c2_128, %c0_129] : memref<10x10x8xf32, #tpu.memory_space<vmem>>, vector<8x8x8xf32>
    %105 = vector.shape_cast %104 : vector<8x8x8xf32> to vector<64x8xf32>
    %c2_130 = arith.constant 2 : index
    %c0_131 = arith.constant 0 : index
    %c0_132 = arith.constant 0 : index
    %106 = vector.load %arg11[%c2_130, %c0_131, %c0_132] : memref<10x10x8xf32, #tpu.memory_space<vmem>>, vector<8x8x8xf32>
    %107 = vector.shape_cast %106 : vector<8x8x8xf32> to vector<64x8xf32>
    %c2_133 = arith.constant 2 : index
    %c1_134 = arith.constant 1 : index
    %c0_135 = arith.constant 0 : index
    %108 = vector.load %arg11[%c2_133, %c1_134, %c0_135] : memref<10x10x8xf32, #tpu.memory_space<vmem>>, vector<8x8x8xf32>
    %109 = vector.shape_cast %108 : vector<8x8x8xf32> to vector<64x8xf32>
    %c2_136 = arith.constant 2 : index
    %c2_137 = arith.constant 2 : index
    %c0_138 = arith.constant 0 : index
    %110 = vector.load %arg11[%c2_136, %c2_137, %c0_138] : memref<10x10x8xf32, #tpu.memory_space<vmem>>, vector<8x8x8xf32>
    %111 = vector.shape_cast %110 : vector<8x8x8xf32> to vector<64x8xf32>
    %112 = tpu.concatenate %95, %97, %99, %101, %103, %105, %107, %109, %111 in 1 : vector<64x8xf32>, vector<64x8xf32>, vector<64x8xf32>, vector<64x8xf32>, vector<64x8xf32>, vector<64x8xf32>, vector<64x8xf32>, vector<64x8xf32>, vector<64x8xf32> -> vector<64x72xf32>
    %113 = arith.truncf %112 : vector<64x72xf32> to vector<64x72xbf16>
    %c0_139 = arith.constant 0 : index
    %c0_140 = arith.constant 0 : index
    %114 = vector.load %arg8[%c0_139, %c0_140] : memref<72x16xbf16, #tpu.memory_space<vmem>>, vector<72x16xbf16>
    %cst_141 = arith.constant dense<0.000000e+00> : vector<64x16xf32>
    %115 = tpu.matmul %113, %114, %cst_141 {dimension_numbers = #tpu.dot_dimension_numbers<[1], [0], [0], [1], [0, 0, 1, 1], [], []>} : vector<64x72xbf16>, vector<72x16xbf16>, vector<64x16xf32> -> vector<64x16xf32>
    %c0_142 = arith.constant 0 : index
    %c0_143 = arith.constant 0 : index
    %116 = vector.load %arg9[%c0_142, %c0_143] : memref<1x16xf32, #tpu.memory_space<vmem>>, vector<1x16xf32>
    %117 = vector.broadcast %116 : vector<1x16xf32> to vector<64x16xf32>
    %118 = arith.addf %115, %117 : vector<64x16xf32>
    %cst_144 = arith.constant 0.000000e+00 : f32
    %119 = vector.broadcast %cst_144 : f32 to vector<64x16xf32>
    %120 = arith.maximumf %118, %119 : vector<64x16xf32>
    %121 = vector.shape_cast %120 : vector<64x16xf32> to vector<1x64x16xf32>
    %c0_145 = arith.constant 0 : index
    %c0_146 = arith.constant 0 : index
    %c0_147 = arith.constant 0 : index
    %122 = vector.load %arg10[%c0_145, %c0_146, %c0_147] : memref<1x64x16xf32, #tpu.memory_space<vmem>>, vector<1x64x16xf32>
    tpu.vector_store %arg10[%c0_145, %c0_146, %c0_147], %121 {strides = array<i32>} : memref<1x64x16xf32, #tpu.memory_space<vmem>>, vector<1x64x16xf32>,
    return
  }
  func.func @transform_0(%arg0: i32) -> (i32, i32, i32, i32) {
    %c0_i32 = arith.constant 0 : i32
    %c0_i32_0 = arith.constant 0 : i32
    %c0_i32_1 = arith.constant 0 : i32
    %c0_i32_2 = arith.constant 0 : i32
    return %arg0, %c0_i32, %c0_i32_0, %c0_i32_1 : i32, i32, i32, i32
  }
  func.func @transform_1(%arg0: i32) -> (i32, i32) {
    %c0_i32 = arith.constant 0 : i32
    %c0_i32_0 = arith.constant 0 : i32
    %c0_i32_1 = arith.constant 0 : i32
    return %c0_i32, %c0_i32_0 : i32, i32
  }
  func.func @transform_2(%arg0: i32) -> (i32, i32) {
    %c0_i32 = arith.constant 0 : i32
    %c0_i32_0 = arith.constant 0 : i32
    %c0_i32_1 = arith.constant 0 : i32
    return %c0_i32, %c0_i32_0 : i32, i32
  }
  func.func @transform_3(%arg0: i32) -> (i32, i32) {
    %c0_i32 = arith.constant 0 : i32
    %c0_i32_0 = arith.constant 0 : i32
    %c0_i32_1 = arith.constant 0 : i32
    return %c0_i32, %c0_i32_0 : i32, i32
  }
  func.func @transform_4(%arg0: i32) -> (i32, i32) {
    %c0_i32 = arith.constant 0 : i32
    %c0_i32_0 = arith.constant 0 : i32
    %c0_i32_1 = arith.constant 0 : i32
    return %c0_i32, %c0_i32_0 : i32, i32
  }
  func.func @transform_5(%arg0: i32) -> (i32, i32) {
    %c0_i32 = arith.constant 0 : i32
    %c0_i32_0 = arith.constant 0 : i32
    %c0_i32_1 = arith.constant 0 : i32
    return %c0_i32, %c0_i32_0 : i32, i32
  }
  func.func @transform_6(%arg0: i32) -> (i32, i32) {
    %c0_i32 = arith.constant 0 : i32
    %c0_i32_0 = arith.constant 0 : i32
    %c0_i32_1 = arith.constant 0 : i32
    return %c0_i32, %c0_i32_0 : i32, i32
  }
  func.func @transform_7(%arg0: i32) -> (i32, i32) {
    %c0_i32 = arith.constant 0 : i32
    %c0_i32_0 = arith.constant 0 : i32
    %c0_i32_1 = arith.constant 0 : i32
    return %c0_i32, %c0_i32_0 : i32, i32
  }
  func.func @transform_8(%arg0: i32) -> (i32, i32) {
    %c0_i32 = arith.constant 0 : i32
    %c0_i32_0 = arith.constant 0 : i32
    %c0_i32_1 = arith.constant 0 : i32
    return %c0_i32, %c0_i32_0 : i32, i32
  }
  func.func @transform_9(%arg0: i32) -> (i32, i32, i32) {
    %c0_i32 = arith.constant 0 : i32
    %c0_i32_0 = arith.constant 0 : i32
    %c0_i32_1 = arith.constant 0 : i32
    return %arg0, %c0_i32, %c0_i32_0 : i32, i32, i32
  }
}

</mosaic_0001>

<llo_original>
// kernel: _lambda_.1
$region0: #{_lambda_.1}
  #allocation0 [shape = 'u32[]', space=smem, size = 0x4, offset = 0x4, fixed_abs, tag = 'smem constant byte address 0x4 - core index']
  #allocation1 [shape = 'u32[144,128]{1,0:T(1,128)}', space=vmem, size = 0x12000, scoped, tag = 'internal scratch']
  #allocation2 [shape = 'f32[10,10,8]{2,1,0:T(8,128)}', space=vmem, size = 0x14000, scoped, tag = 'scratch operand']
  #allocation3 [shape = 'f32[10,10,16]{2,1,0:T(8,128)}', space=vmem, size = 0x14000, scoped, tag = 'scratch operand']
  %s0 = inlined_call_operand.vmem [shape: bf16[2,9,9,32], index: 0, kind: input, shape index: {}]
  %s1 = inlined_call_operand.vmem [shape: bf16[128,8], index: 1, kind: input, shape index: {}]
  %s2 = inlined_call_operand.vmem [shape: f32[1,8], index: 2, kind: input, shape index: {}, may-alias: {2,6}]
  %s3 = inlined_call_operand.vmem [shape: bf16[72,16], index: 3, kind: input, shape index: {}]
  %s4 = inlined_call_operand.vmem [shape: f32[1,16], index: 4, kind: input, shape index: {}, may-alias: {4,8}]
  %s5 = inlined_call_operand.vmem [shape: bf16[144,8], index: 5, kind: input, shape index: {}]
  %s6 = inlined_call_operand.vmem [shape: f32[1,8], index: 6, kind: input, shape index: {}, may-alias: {2,6}]
  %s7 = inlined_call_operand.vmem [shape: bf16[72,16], index: 7, kind: input, shape index: {}]
  %s8 = inlined_call_operand.vmem [shape: f32[1,16], index: 8, kind: input, shape index: {}, may-alias: {4,8}]
  %s9 = inlined_call_operand.hbm [shape: f32[2,64,16], index: 9, kind: output, shape index: {}]
  %s10 = sld [smem:[#allocation0]]
  $region69: #{_lambda_.1} parent=0
    _
  %s12 = ssub.s32 1, %s10
  %s13 = scalar_select 0, %s12, %s10
  $region1: #{_lambda_.1} parent=0
    #allocation4 [shape = 'u8[65536]{0}', space=vmem, size = 0x10000, scoped, tag = 'output window, operand 0']
    #allocation5 [shape = 's32[2]{0}', space=sflag, size = 0x8, scoped, tag = 'scoped memory for _lambda_.1']
    %14 = vsyncpa [#allocation5], 0
    %s15 = scalar_lea.sflag [#allocation5], 1
    %16 = vsyncpa %s15, 0
    loop: start=0, step=1, limit=4
    $region2: #{_lambda_.1} parent=1 // loop_pre_header
      _
    $region3: #{_lambda_.1} parent=1 // loop_header
      %s18 = sphi 0, %s22
      %p19 = scmp.ge.s32.totalorder %s18, 4
      %s28 = sphi 0, %s30
      %s31 = sphi 0, %s28
      %s32 = sphi 0, %s31
      %s48 = sphi 0, %s32
      %s52 = sphi 0, %s52
      %s54 = sphi 0, %s52
      %s55 = sphi 0, %s54
      %s69 = sphi 0, %s55
      %s73 = sphi 0, %s73
      %s75 = sphi 0, %s73
      %s76 = sphi 0, %s75
      %s90 = sphi 0, %s76
      %s94 = sphi 0, %s94
      %s96 = sphi 0, %s94
      %s97 = sphi 0, %s96
      %s111 = sphi 0, %s97
      %s115 = sphi 0, %s115
      %s117 = sphi 0, %s115
      %s118 = sphi 0, %s117
      %s132 = sphi 0, %s118
      %s136 = sphi 0, %s136
      %s138 = sphi 0, %s136
      %s139 = sphi 0, %s138
      %s153 = sphi 0, %s139
      %s157 = sphi 0, %s157
      %s159 = sphi 0, %s157
      %s160 = sphi 0, %s159
      %s174 = sphi 0, %s160
      %s178 = sphi 0, %s178
      %s180 = sphi 0, %s178
      %s181 = sphi 0, %s180
      %s195 = sphi 0, %s181
      %s199 = sphi 0, %s199
      %s201 = sphi 0, %s199
      %s202 = sphi 0, %s201
      %s216 = sphi 0, %s202
      %s222 = sphi 0, %s224
      %s225 = sphi 0, %s222
      %s226 = sphi 0, %s225
      %s242 = sphi 0, %s226
    $region4: #{_lambda_.1} parent=1 // loop_header_branch
      %21 = sbr.rel (%p19) target = $region8
    $region5: #{_lambda_.1} parent=1 // loop_body
      %s23 = ssub.s32 %s18, 1
      %s24 = ssub.s32 %s18, 2
      %s25 = sadd.s32 %s18, 1
      %s26 = ssub.s32 %s18, %s25
      %p27 = scmp.eq.s32.totalorder %s26, 0
      %s29 = sadd.s32 %s28, 1
      %s30 = scalar_select %p27, %s28, %s29
      %p33 = pneg %p27
      %p34 = scmp.eq.s32.totalorder %s18, 1
      %p35 = por %p33, %p34
      %p36 = scmp.ne.s32.totalorder %s28, %s31
      %p37 = scmp.eq.s32.totalorder %s18, 0
      %p38 = por %p36, %p37
      %p39 = scmp.ne.s32.totalorder %s28, %s31
      %p40 = scmp.eq.s32.totalorder %s23, 1
      %p41 = por %p39, %p40
      %p42 = scmp.ne.s32.totalorder %s31, %s32
      %p43 = scmp.eq.s32.totalorder %s23, 0
      %p44 = por %p42, %p43
      %p45 = scmp.ne.s32.totalorder %s31, %s32
      %p46 = scmp.eq.s32.totalorder %s24, 1
      %p47 = por %p45, %p46
      %p49 = scmp.ne.s32.totalorder %s32, %s48
      %p50 = scmp.eq.s32.totalorder %s24, 0
      %p51 = por %p49, %p50
      %s53 = sadd.s32 %s52, 1
      %p56 = scmp.eq.s32.totalorder %s18, 1
      %p57 = scmp.ne.s32.totalorder %s52, %s54
      %p58 = scmp.eq.s32.totalorder %s18, 0
      %p59 = por %p57, %p58
      %p60 = scmp.ne.s32.totalorder %s52, %s54
      %p61 = scmp.eq.s32.totalorder %s23, 1
      %p62 = por %p60, %p61
      %p63 = scmp.ne.s32.totalorder %s54, %s55
      %p64 = scmp.eq.s32.totalorder %s23, 0
      %p65 = por %p63, %p64
      %p66 = scmp.ne.s32.totalorder %s54, %s55
      %p67 = scmp.eq.s32.totalorder %s24, 1
      %p68 = por %p66, %p67
      %p70 = scmp.ne.s32.totalorder %s55, %s69
      %p71 = scmp.eq.s32.totalorder %s24, 0
      %p72 = por %p70, %p71
      %s74 = sadd.s32 %s73, 1
      %p77 = scmp.eq.s32.totalorder %s18, 1
      %p78 = scmp.ne.s32.totalorder %s73, %s75
      %p79 = scmp.eq.s32.totalorder %s18, 0
      %p80 = por %p78, %p79
      %p81 = scmp.ne.s32.totalorder %s73, %s75
      %p82 = scmp.eq.s32.totalorder %s23, 1
      %p83 = por %p81, %p82
      %p84 = scmp.ne.s32.totalorder %s75, %s76
      %p85 = scmp.eq.s32.totalorder %s23, 0
      %p86 = por %p84, %p85
      %p87 = scmp.ne.s32.totalorder %s75, %s76
      %p88 = scmp.eq.s32.totalorder %s24, 1
      %p89 = por %p87, %p88
      %p91 = scmp.ne.s32.totalorder %s76, %s90
      %p92 = scmp.eq.s32.totalorder %s24, 0
      %p93 = por %p91, %p92
      %s95 = sadd.s32 %s94, 1
      %p98 = scmp.eq.s32.totalorder %s18, 1
      %p99 = scmp.ne.s32.totalorder %s94, %s96
      %p100 = scmp.eq.s32.totalorder %s18, 0
      %p101 = por %p99, %p100
      %p102 = scmp.ne.s32.totalorder %s94, %s96
      %p103 = scmp.eq.s32.totalorder %s23, 1
      %p104 = por %p102, %p103
      %p105 = scmp.ne.s32.totalorder %s96, %s97
      %p106 = scmp.eq.s32.totalorder %s23, 0
      %p107 = por %p105, %p106
      %p108 = scmp.ne.s32.totalorder %s96, %s97
      %p109 = scmp.eq.s32.totalorder %s24, 1
      %p110 = por %p108, %p109
      %p112 = scmp.ne.s32.totalorder %s97, %s111
      %p113 = scmp.eq.s32.totalorder %s24, 0
      %p114 = por %p112, %p113
      %s116 = sadd.s32 %s115, 1
      %p119 = scmp.eq.s32.totalorder %s18, 1
      %p120 = scmp.ne.s32.totalorder %s115, %s117
      %p121 = scmp.eq.s32.totalorder %s18, 0
      %p122 = por %p120, %p121
      %p123 = scmp.ne.s32.totalorder %s115, %s117
      %p124 = scmp.eq.s32.totalorder %s23, 1
      %p125 = por %p123, %p124
      %p126 = scmp.ne.s32.totalorder %s117, %s118
      %p127 = scmp.eq.s32.totalorder %s23, 0
      %p128 = por %p126, %p127
      %p129 = scmp.ne.s32.totalorder %s117, %s118
      %p130 = scmp.eq.s32.totalorder %s24, 1
      %p131 = por %p129, %p130
      %p133 = scmp.ne.s32.totalorder %s118, %s132
      %p134 = scmp.eq.s32.totalorder %s24, 0
      %p135 = por %p133, %p134
      %s137 = sadd.s32 %s136, 1
      %p140 = scmp.eq.s32.totalorder %s18, 1
      %p141 = scmp.ne.s32.totalorder %s136, %s138
      %p142 = scmp.eq.s32.totalorder %s18, 0
      %p143 = por %p141, %p142
      %p144 = scmp.ne.s32.totalorder %s136, %s138
      %p145 = scmp.eq.s32.totalorder %s23, 1
      %p146 = por %p144, %p145
      %p147 = scmp.ne.s32.totalorder %s138, %s139
      %p148 = scmp.eq.s32.totalorder %s23, 0
      %p149 = por %p147, %p148
      %p150 = scmp.ne.s32.totalorder %s138, %s139
      %p151 = scmp.eq.s32.totalorder %s24, 1
      %p152 = por %p150, %p151
      %p154 = scmp.ne.s32.totalorder %s139, %s153
      %p155 = scmp.eq.s32.totalorder %s24, 0
      %p156 = por %p154, %p155
      %s158 = sadd.s32 %s157, 1
      %p161 = scmp.eq.s32.totalorder %s18, 1
      %p162 = scmp.ne.s32.totalorder %s157, %s159
      %p163 = scmp.eq.s32.totalorder %s18, 0
      %p164 = por %p162, %p163
      %p165 = scmp.ne.s32.totalorder %s157, %s159
      %p166 = scmp.eq.s32.totalorder %s23, 1
      %p167 = por %p165, %p166
      %p168 = scmp.ne.s32.totalorder %s159, %s160
      %p169 = scmp.eq.s32.totalorder %s23, 0
      %p170 = por %p168, %p169
      %p171 = scmp.ne.s32.totalorder %s159, %s160
      %p172 = scmp.eq.s32.totalorder %s24, 1
      %p173 = por %p171, %p172
      %p175 = scmp.ne.s32.totalorder %s160, %s174
      %p176 = scmp.eq.s32.totalorder %s24, 0
      %p177 = por %p175, %p176
      %s179 = sadd.s32 %s178, 1
      %p182 = scmp.eq.s32.totalorder %s18, 1
      %p183 = scmp.ne.s32.totalorder %s178, %s180
      %p184 = scmp.eq.s32.totalorder %s18, 0
      %p185 = por %p183, %p184
      %p186 = scmp.ne.s32.totalorder %s178, %s180
      %p187 = scmp.eq.s32.totalorder %s23, 1
      %p188 = por %p186, %p187
      %p189 = scmp.ne.s32.totalorder %s180, %s181
      %p190 = scmp.eq.s32.totalorder %s23, 0
      %p191 = por %p189, %p190
      %p192 = scmp.ne.s32.totalorder %s180, %s181
      %p193 = scmp.eq.s32.totalorder %s24, 1
      %p194 = por %p192, %p193
      %p196 = scmp.ne.s32.totalorder %s181, %s195
      %p197 = scmp.eq.s32.totalorder %s24, 0
      %p198 = por %p196, %p197
      %s200 = sadd.s32 %s199, 1
      %p203 = scmp.eq.s32.totalorder %s18, 1
      %p204 = scmp.ne.s32.totalorder %s199, %s201
      %p205 = scmp.eq.s32.totalorder %s18, 0
      %p206 = por %p204, %p205
      %p207 = scmp.ne.s32.totalorder %s199, %s201
      %p208 = scmp.eq.s32.totalorder %s23, 1
      %p209 = por %p207, %p208
      %p210 = scmp.ne.s32.totalorder %s201, %s202
      %p211 = scmp.eq.s32.totalorder %s23, 0
      %p212 = por %p210, %p211
      %p213 = scmp.ne.s32.totalorder %s201, %s202
      %p214 = scmp.eq.s32.totalorder %s24, 1
      %p215 = por %p213, %p214
      %p217 = scmp.ne.s32.totalorder %s202, %s216
      %p218 = scmp.eq.s32.totalorder %s24, 0
      %p219 = por %p217, %p218
      %s220 = ssub.s32 %s18, %s25
      %p221 = scmp.eq.s32.totalorder %s220, 0
      %s223 = sadd.s32 %s222, 1
      %s224 = scalar_select %p221, %s222, %s223
      %p227 = pneg %p221
      %p228 = scmp.eq.s32.totalorder %s18, 1
      %p229 = por %p227, %p228
      %p230 = scmp.ne.s32.totalorder %s222, %s225
      %p231 = scmp.eq.s32.totalorder %s18, 0
      %p232 = por %p230, %p231
      %p233 = scmp.ne.s32.totalorder %s222, %s225
      %p234 = scmp.eq.s32.totalorder %s23, 1
      %p235 = por %p233, %p234
      %p236 = scmp.ne.s32.totalorder %s225, %s226
      %p237 = scmp.eq.s32.totalorder %s23, 0
      %p238 = por %p236, %p237
      %p239 = scmp.ne.s32.totalorder %s225, %s226
      %p240 = scmp.eq.s32.totalorder %s24, 1
      %p241 = por %p239, %p240
      %p243 = scmp.ne.s32.totalorder %s226, %s242
      %p244 = scmp.eq.s32.totalorder %s24, 0
      %p245 = por %p243, %p244
      %p246 = scmp.le.s32.totalorder 1, %s18
      %p247 = scmp.lt.s32.totalorder %s18, 3
      %p248 = pnand %p246, %p247
      %p249 = pneg %p248
      // Predicated region
      $region9: #{_lambda_.1} parent=5 // pred_check
        _
      $region10: #{_lambda_.1} parent=5 // pred_check_branch
        %251 = sbr.rel (%p248) target = $region12
      $region11: #{_lambda_.1} parent=5 // pred_region
        %s252 = ssub.s32 %s18, 1
        // Predicated region
        $region13: #{_lambda_.1} parent=11 // pred_check
          %p253 = pneg %p65
        $region14: #{_lambda_.1} parent=11 // pred_check_branch
          %255 = sbr.rel (%p253) target = $region16
        $region15: #{_lambda_.1} parent=11 // pred_region
          _
        $region16: #{_lambda_.1} parent=11 // pred_fallthru
          _
        // Predicated region
        $region17: #{_lambda_.1} parent=11 // pred_check
          %p256 = pneg %p86
        $region18: #{_lambda_.1} parent=11 // pred_check_branch
          %258 = sbr.rel (%p256) target = $region20
        $region19: #{_lambda_.1} parent=11 // pred_region
          _
        $region20: #{_lambda_.1} parent=11 // pred_fallthru
          _
        // Predicated region
        $region21: #{_lambda_.1} parent=11 // pred_check
          %p259 = pneg %p107
        $region22: #{_lambda_.1} parent=11 // pred_check_branch
          %261 = sbr.rel (%p259) target = $region24
        $region23: #{_lambda_.1} parent=11 // pred_region
          _
        $region24: #{_lambda_.1} parent=11 // pred_fallthru
          _
        // Predicated region
        $region25: #{_lambda_.1} parent=11 // pred_check
          %p262 = pneg %p128
        $region26: #{_lambda_.1} parent=11 // pred_check_branch
          %264 = sbr.rel (%p262) target = $region28
        $region27: #{_lambda_.1} parent=11 // pred_region
          _
        $region28: #{_lambda_.1} parent=11 // pred_fallthru
          _
        // Predicated region
        $region29: #{_lambda_.1} parent=11 // pred_check
          %p265 = pneg %p149
        $region30: #{_lambda_.1} parent=11 // pred_check_branch
          %267 = sbr.rel (%p265) target = $region32
        $region31: #{_lambda_.1} parent=11 // pred_region
          _
        $region32: #{_lambda_.1} parent=11 // pred_fallthru
          _
        // Predicated region
        $region33: #{_lambda_.1} parent=11 // pred_check
          %p268 = pneg %p170
        $region34: #{_lambda_.1} parent=11 // pred_check_branch
          %270 = sbr.rel (%p268) target = $region36
        $region35: #{_lambda_.1} parent=11 // pred_region
          _
        $region36: #{_lambda_.1} parent=11 // pred_fallthru
          _
        // Predicated region
        $region37: #{_lambda_.1} parent=11 // pred_check
          %p271 = pneg %p191
        $region38: #{_lambda_.1} parent=11 // pred_check_branch
          %273 = sbr.rel (%p271) target = $region40
        $region39: #{_lambda_.1} parent=11 // pred_region
          _
        $region40: #{_lambda_.1} parent=11 // pred_fallthru
          _
        // Predicated region
        $region41: #{_lambda_.1} parent=11 // pred_check
          %p274 = pneg %p212
        $region42: #{_lambda_.1} parent=11 // pred_check_branch
          %276 = sbr.rel (%p274) target = $region44
        $region43: #{_lambda_.1} parent=11 // pred_region
          _
        $region44: #{_lambda_.1} parent=11 // pred_fallthru
          _
      $region12: #{_lambda_.1} parent=5 // pred_fallthru
        _
      %p277 = scmp.lt.s32.totalorder %s18, 2
      // Predicated region
      $region45: #{_lambda_.1} parent=5 // pred_check
        %p278 = pneg %p277
      $region46: #{_lambda_.1} parent=5 // pred_check_branch
        %280 = sbr.rel (%p278) target = $region48
      $region47: #{_lambda_.1} parent=5 // pred_region
        // Predicated region
        $region49: #{_lambda_.1} parent=47 // pred_check
          %p281 = pneg %p38
        $region50: #{_lambda_.1} parent=47 // pred_check_branch
          %283 = sbr.rel (%p281) target = $region52
        $region51: #{_lambda_.1} parent=47 // pred_region
          %p284 = scmp.lt.s32.totalorder %s18, 1
          %s285 = scalar_select %p284, %s18, 1
          %s286 = smul.addr %s285, 18
          %s287 = smul.addr %s286, 4
          %s288 = scalar_lea.vmem %s0, %s287
        $region52: #{_lambda_.1} parent=47 // pred_fallthru
          _
      $region48: #{_lambda_.1} parent=5 // pred_fallthru
        _
      %p289 = scmp.le.s32.totalorder 1, %s18
      %p290 = scmp.lt.s32.totalorder %s18, 3
      %p291 = pnand %p289, %p290
      %p292 = pneg %p291
      // Predicated region
      $region53: #{_lambda_.1} parent=5 // pred_check
        _
      $region54: #{_lambda_.1} parent=5 // pred_check_branch
        %294 = sbr.rel (%p291) target = $region56
      $region55: #{_lambda_.1} parent=5 // pred_region
        %s295 = ssub.s32 %s18, 1
        %p296 = scmp.lt.s32.totalorder %s23, 1
        %s297 = scalar_select %p296, %s23, 1
        %s298 = smul.addr %s297, 18
        %s299 = smul.addr %s298, 4
        %s300 = scalar_lea.vmem %s0, %s299
        %p301 = pneg %p44
        %p302 = pneg %p41
        %p303 = pneg %p65
        %p304 = pneg %p62
        %p305 = pneg %p86
        %p306 = pneg %p83
        %p307 = pneg %p107
        %p308 = pneg %p104
        %p309 = pneg %p128
        %p310 = pneg %p125
        %p311 = pneg %p149
        %p312 = pneg %p146
        %p313 = pneg %p170
        %p314 = pneg %p167
        %p315 = pneg %p191
        %p316 = pneg %p188
        %p317 = pneg %p212
        %p318 = pneg %p209
        %p319 = pneg %p238
        %p320 = pneg %p235
        %s321 = sand.u32 %s225, 1
        %s322 = scalar_lea.sflag [#allocation5], %s321
        %s323 = sand.u32 %s225, 1
        %s324 = smul.addr %s323, 64
        %s325 = scalar_lea.vmem [#allocation4], %s324
        %p326 = scmp.lt.s32.totalorder %s23, 1
        %s327 = scalar_select %p326, %s23, 1
        %s328 = smul.addr %s327, 18
        %s329 = smul.addr %s328, 4
        %s330 = scalar_lea.vmem %s0, %s329
        %vm332 = vcmask 64512
        %333 = vst.msk [vmem:[#allocation2] sm:$0xff] %vm332, 0.0
        %vm334 = vcmask 58368
        %335 = vst.msk [vmem:[#allocation2 + $0x8] sm:$0x3] %vm334, 0.0
        %s336 = scalar_lea.vmem [#allocation2], 144
        %337 = vst.msk [vmem:[%s336] sm:$0xff] %vm332, 0.0
        %338 = vst.msk [vmem:[%s336 + $0x8] sm:$0x3] %vm334, 0.0
        %s339 = scalar_lea.vmem [#allocation2], 16
        %vm340 = vcmask 57344
        %341 = vst.msk [vmem:[%s339] sm:$0x1] %vm340, 0.0
        %342 = vst.msk [vmem:[%s339 + $0x10] sm:$0x1] %vm340, 0.0
        %343 = vst.msk [vmem:[%s339 + $0x20] sm:$0x1] %vm340, 0.0
        %344 = vst.msk [vmem:[%s339 + $0x30] sm:$0x1] %vm340, 0.0
        %345 = vst.msk [vmem:[%s339 + $0x40] sm:$0x1] %vm340, 0.0
        %346 = vst.msk [vmem:[%s339 + $0x50] sm:$0x1] %vm340, 0.0
        %347 = vst.msk [vmem:[%s339 + $0x60] sm:$0x1] %vm340, 0.0
        %348 = vst.msk [vmem:[%s339 + $0x70] sm:$0x1] %vm340, 0.0
        %349 = vst.msk [vmem:[%s339 + $0x9] sm:$0x1] %vm340, 0.0
        %350 = vst.msk [vmem:[%s339 + $0x19] sm:$0x1] %vm340, 0.0
        %351 = vst.msk [vmem:[%s339 + $0x29] sm:$0x1] %vm340, 0.0
        %352 = vst.msk [vmem:[%s339 + $0x39] sm:$0x1] %vm340, 0.0
        %353 = vst.msk [vmem:[%s339 + $0x49] sm:$0x1] %vm340, 0.0
        %354 = vst.msk [vmem:[%s339 + $0x59] sm:$0x1] %vm340, 0.0
        %355 = vst.msk [vmem:[%s339 + $0x69] sm:$0x1] %vm340, 0.0
        %356 = vst.msk [vmem:[%s339 + $0x79] sm:$0x1] %vm340, 0.0
        %vm357 = vcmask 130048
        %358 = vst.msk [vmem:[#allocation3] sm:$0xff] %vm357, 0.0
        %vm359 = vcmask 123904
        %360 = vst.msk [vmem:[#allocation3 + $0x8] sm:$0x3] %vm359, 0.0
        %s361 = scalar_lea.vmem [#allocation3], 144
        %362 = vst.msk [vmem:[%s361] sm:$0xff] %vm357, 0.0
        %363 = vst.msk [vmem:[%s361 + $0x8] sm:$0x3] %vm359, 0.0
        %s364 = scalar_lea.vmem [#allocation3], 16
        %vm365 = vcmask 122880
        %366 = vst.msk [vmem:[%s364] sm:$0x1] %vm365, 0.0
        %367 = vst.msk [vmem:[%s364 + $0x10] sm:$0x1] %vm365, 0.0
        %368 = vst.msk [vmem:[%s364 + $0x20] sm:$0x1] %vm365, 0.0
        %369 = vst.msk [vmem:[%s364 + $0x30] sm:$0x1] %vm365, 0.0
        %370 = vst.msk [vmem:[%s364 + $0x40] sm:$0x1] %vm365, 0.0
        %371 = vst.msk [vmem:[%s364 + $0x50] sm:$0x1] %vm365, 0.0
        %372 = vst.msk [vmem:[%s364 + $0x60] sm:$0x1] %vm365, 0.0
        %373 = vst.msk [vmem:[%s364 + $0x70] sm:$0x1] %vm365, 0.0
        %374 = vst.msk [vmem:[%s364 + $0x9] sm:$0x1] %vm365, 0.0
        %375 = vst.msk [vmem:[%s364 + $0x19] sm:$0x1] %vm365, 0.0
        %376 = vst.msk [vmem:[%s364 + $0x29] sm:$0x1] %vm365, 0.0
        %377 = vst.msk [vmem:[%s364 + $0x39] sm:$0x1] %vm365, 0.0
        %378 = vst.msk [vmem:[%s364 + $0x49] sm:$0x1] %vm365, 0.0
        %379 = vst.msk [vmem:[%s364 + $0x59] sm:$0x1] %vm365, 0.0
        %380 = vst.msk [vmem:[%s364 + $0x69] sm:$0x1] %vm365, 0.0
        %381 = vst.msk [vmem:[%s364 + $0x79] sm:$0x1] %vm365, 0.0
        %v382 = vld [vmem:[%s330] sm:$0xf]
        %v383 = vld [vmem:[%s330 + $0x4] sm:$0x1]
        %v384 = vld [vmem:[%s330 + $0x8] sm:$0xf]
        %v385 = vld [vmem:[%s330 + $0xc] sm:$0x1]
        %v386 = vld [vmem:[%s330 + $0x10] sm:$0xf]
        %v387 = vld [vmem:[%s330 + $0x14] sm:$0x1]
        %v388 = vld [vmem:[%s330 + $0x18] sm:$0xf]
        %v389 = vld [vmem:[%s330 + $0x1c] sm:$0x1]
        %v390 = vld [vmem:[%s330 + $0x20] sm:$0xf]
        %v391 = vld [vmem:[%s330 + $0x24] sm:$0x1]
        %v392 = vld [vmem:[%s330 + $0x28] sm:$0xf]
        %v393 = vld [vmem:[%s330 + $0x2c] sm:$0x1]
        %v394 = vld [vmem:[%s330 + $0x30] sm:$0xf]
        %v395 = vld [vmem:[%s330 + $0x34] sm:$0x1]
        %v396 = vld [vmem:[%s330 + $0x38] sm:$0xf]
        %v397 = vld [vmem:[%s330 + $0x3c] sm:$0x1]
        %v398 = vld [vmem:[%s330 + $0x40] sm:$0xf]
        %v399 = vld [vmem:[%s330 + $0x44] sm:$0x1]
        %vm400 = vsmask.f32 3328
        %vm401 = vsmask.f32 7440
        %vm402 = vmor %vm400, %vm401
        %v404 = vshrl.u32 %v382, 16
        %v406 = vrot.slane %v404, 4
        %v407 = vshll.u32 %v382, 16
        %v409 = vrot.slane %v407, 5
        %v410 = vor.u32 %v406, %v409
        %v411 = vrot.slane %v410, 4
        %v413 = vshll.u32 %v383, 16
        %v415 = vrot.slane %v413, 5
        %v416 = vsel %vm402, %v411, %v415
        %v418 = vshrl.u32 %v384, 16
        %v420 = vrot.slane %v418, 4
        %v421 = vshll.u32 %v384, 16
        %v423 = vrot.slane %v421, 5
        %v424 = vor.u32 %v420, %v423
        %v425 = vrot.slane %v424, 4
        %v427 = vshll.u32 %v385, 16
        %v429 = vrot.slane %v427, 5
        %v430 = vsel %vm402, %v425, %v429
        %v432 = vshrl.u32 %v386, 16
        %v434 = vrot.slane %v432, 4
        %v435 = vshll.u32 %v386, 16
        %v437 = vrot.slane %v435, 5
        %v438 = vor.u32 %v434, %v437
        %v439 = vrot.slane %v438, 4
        %v441 = vshll.u32 %v387, 16
        %v443 = vrot.slane %v441, 5
        %v444 = vsel %vm402, %v439, %v443
        %v446 = vshrl.u32 %v388, 16
        %v448 = vrot.slane %v446, 4
        %v449 = vshll.u32 %v388, 16
        %v451 = vrot.slane %v449, 5
        %v452 = vor.u32 %v448, %v451
        %v453 = vrot.slane %v452, 4
        %v455 = vshll.u32 %v389, 16
        %v457 = vrot.slane %v455, 5
        %v458 = vsel %vm402, %v453, %v457
        %v460 = vshrl.u32 %v390, 16
        %v462 = vrot.slane %v460, 4
        %v463 = vshll.u32 %v390, 16
        %v465 = vrot.slane %v463, 5
        %v466 = vor.u32 %v462, %v465
        %v467 = vrot.slane %v466, 4
        %v469 = vshll.u32 %v391, 16
        %v471 = vrot.slane %v469, 5
        %v472 = vsel %vm402, %v467, %v471
        %v474 = vshrl.u32 %v392, 16
        %v476 = vrot.slane %v474, 4
        %v477 = vshll.u32 %v392, 16
        %v479 = vrot.slane %v477, 5
        %v480 = vor.u32 %v476, %v479
        %v481 = vrot.slane %v480, 4
        %v483 = vshll.u32 %v393, 16
        %v485 = vrot.slane %v483, 5
        %v486 = vsel %vm402, %v481, %v485
        %v488 = vshrl.u32 %v394, 16
        %v490 = vrot.slane %v488, 4
        %v491 = vshll.u32 %v394, 16
        %v493 = vrot.slane %v491, 5
        %v494 = vor.u32 %v490, %v493
        %v495 = vrot.slane %v494, 4
        %v497 = vshll.u32 %v395, 16
        %v499 = vrot.slane %v497, 5
        %v500 = vsel %vm402, %v495, %v499
        %v502 = vshrl.u32 %v396, 16
        %v504 = vrot.slane %v502, 4
        %v505 = vshll.u32 %v396, 16
        %v507 = vrot.slane %v505, 5
        %v508 = vor.u32 %v504, %v507
        %v509 = vrot.slane %v508, 4
        %v511 = vshll.u32 %v397, 16
        %v513 = vrot.slane %v511, 5
        %v514 = vsel %vm402, %v509, %v513
        %v516 = vshrl.u32 %v398, 16
        %v518 = vrot.slane %v516, 4
        %v519 = vshll.u32 %v398, 16
        %v521 = vrot.slane %v519, 5
        %v522 = vor.u32 %v518, %v521
        %v523 = vrot.slane %v522, 4
        %v525 = vshll.u32 %v399, 16
        %v527 = vrot.slane %v525, 5
        %v528 = vsel %vm402, %v523, %v527
        %v537 = vunpack.c.l.b16 %v382
        %v538 = vunpack.c.l.b16 %v384
        %v539 = vunpack.c.l.b16 %v386
        %v540 = vunpack.c.l.b16 %v388
        %v541 = vunpack.c.l.b16 %v390
        %v542 = vunpack.c.l.b16 %v392
        %v543 = vunpack.c.l.b16 %v394
        %v544 = vunpack.c.l.b16 %v396
        %v545 = vpack.c.b16 %v538, %v537
        %v546 = vpack.c.b16 %v540, %v539
        %v547 = vpack.c.b16 %v542, %v541
        %v548 = vpack.c.b16 %v544, %v543
        %v549 = vunpack.c.l.b16 %v416
        %v550 = vunpack.c.l.b16 %v430
        %v551 = vunpack.c.l.b16 %v444
        %v552 = vunpack.c.l.b16 %v458
        %v553 = vunpack.c.l.b16 %v472
        %v554 = vunpack.c.l.b16 %v486
        %v555 = vunpack.c.l.b16 %v500
        %v556 = vunpack.c.l.b16 %v514
        %v557 = vpack.c.b16 %v550, %v549
        %v558 = vpack.c.b16 %v552, %v551
        %v559 = vpack.c.b16 %v554, %v553
        %v560 = vpack.c.b16 %v556, %v555
        %561 = vrot.lane.b32.xlu0 %v557, 32
        %v562 = vpop.permute.xlu0 %561
        %563 = vrot.lane.b32.xlu0 %v558, 32
        %v564 = vpop.permute.xlu0 %563
        %565 = vrot.lane.b32.xlu0 %v559, 32
        %v566 = vpop.permute.xlu0 %565
        %567 = vrot.lane.b32.xlu0 %v560, 32
        %v568 = vpop.permute.xlu0 %567
        %v570 = vunpack.c.l.b16 %v398
        %v571 = vpack.c.b16 %v539, %v538
        %v572 = vpack.c.b16 %v541, %v540
        %v573 = vpack.c.b16 %v543, %v542
        %v574 = vpack.c.b16 %v570, %v544
        %575 = vrot.lane.b32.xlu0 %v571, 64
        %v576 = vpop.permute.xlu0 %575
        %577 = vrot.lane.b32.xlu0 %v572, 64
        %v578 = vpop.permute.xlu0 %577
        %579 = vrot.lane.b32.xlu0 %v573, 64
        %v580 = vpop.permute.xlu0 %579
        %581 = vrot.lane.b32.xlu0 %v574, 64
        %v582 = vpop.permute.xlu0 %581
        %v583 = vunpack.c.l.b16 %v528
        %v584 = vpack.c.b16 %v551, %v550
        %v585 = vpack.c.b16 %v553, %v552
        %v586 = vpack.c.b16 %v555, %v554
        %v587 = vpack.c.b16 %v583, %v556
        %588 = vrot.lane.b32.xlu0 %v584, 96
        %v589 = vpop.permute.xlu0 %588
        %590 = vrot.lane.b32.xlu0 %v585, 96
        %v591 = vpop.permute.xlu0 %590
        %592 = vrot.lane.b32.xlu0 %v586, 96
        %v593 = vpop.permute.xlu0 %592
        %594 = vrot.lane.b32.xlu0 %v587, 96
        %v595 = vpop.permute.xlu0 %594
        %vm596 = vcmask 261120
        %v599 = vsel %vm596, %v545, %v562
        %v602 = vsel %vm596, %v546, %v564
        %v605 = vsel %vm596, %v547, %v566
        %v608 = vsel %vm596, %v548, %v568
        %vm609 = vcmask 523264
        %v611 = vsel %vm609, %v599, %v576
        %v613 = vsel %vm609, %v602, %v578
        %v615 = vsel %vm609, %v605, %v580
        %v617 = vsel %vm609, %v608, %v582
        %vm618 = vcmask 785408
        %v620 = vsel %vm618, %v611, %v589
        %v623 = vsel %vm618, %v613, %v591
        %v626 = vsel %vm618, %v615, %v593
        %v629 = vsel %vm618, %v617, %v595
        %v631 = vld [vmem:[%s1] sm:$0xf]
        %v632 = vld [vmem:[%s1 + $0x4] sm:$0xf]
        %v633 = vld [vmem:[%s1 + $0x8] sm:$0xf]
        %v634 = vld [vmem:[%s1 + $0xc] sm:$0xf]
        %v635 = vld [vmem:[%s1 + $0x10] sm:$0xf]
        %v636 = vld [vmem:[%s1 + $0x14] sm:$0xf]
        %v637 = vld [vmem:[%s1 + $0x18] sm:$0xf]
        %v638 = vld [vmem:[%s1 + $0x1c] sm:$0xf]
        %v639 = vld [vmem:[%s1 + $0x20] sm:$0xf]
        %v640 = vld [vmem:[%s1 + $0x24] sm:$0xf]
        %v641 = vld [vmem:[%s1 + $0x28] sm:$0xf]
        %v642 = vld [vmem:[%s1 + $0x2c] sm:$0xf]
        %v643 = vld [vmem:[%s1 + $0x30] sm:$0xf]
        %v644 = vld [vmem:[%s1 + $0x34] sm:$0xf]
        %v645 = vld [vmem:[%s1 + $0x38] sm:$0xf]
        %v646 = vld [vmem:[%s1 + $0x3c] sm:$0xf]
        %v647 = vld [vmem:[%s2] sm:$0x1]
        %v649 = vlaneseq
        %v650 = vshrl.u32 %v649, 7
        %v651 = vsub.s32 0, %v650
        %v652 = vrot.slane %v647, %v651
        %v670 = vunpack.c.l.b16 %v631
        %v671 = vunpack.c.l.b16 %v632
        %v672 = vunpack.c.l.b16 %v633
        %v673 = vunpack.c.l.b16 %v634
        %v674 = vunpack.c.l.b16 %v635
        %v675 = vunpack.c.l.b16 %v636
        %v676 = vunpack.c.l.b16 %v637
        %v677 = vunpack.c.l.b16 %v638
        %v678 = vunpack.c.l.b16 %v639
        %v679 = vunpack.c.l.b16 %v640
        %v680 = vunpack.c.l.b16 %v641
        %v681 = vunpack.c.l.b16 %v642
        %v682 = vunpack.c.l.b16 %v643
        %v683 = vunpack.c.l.b16 %v644
        %v684 = vunpack.c.l.b16 %v645
        %v685 = vunpack.c.l.b16 %v646
        %v686 = vpack.c.b16 %v671, %v670
        %v687 = vpack.c.b16 %v673, %v672
        %v688 = vpack.c.b16 %v675, %v674
        %v689 = vpack.c.b16 %v677, %v676
        %v690 = vpack.c.b16 %v679, %v678
        %v691 = vpack.c.b16 %v681, %v680
        %v692 = vpack.c.b16 %v683, %v682
        %v693 = vpack.c.b16 %v685, %v684
        %702 = vmatprep.subr.bf16.mxu0 0
        %703 = vmatpush1.bf16.msra.mxu0 %v686
        %704 = vmatprep.subr.bf16.mxu0 0
        %705 = vmatpush1.bf16.msra.mxu0 %v687
        %706 = vmatprep.subr.bf16.mxu0 0
        %707 = vmatpush1.bf16.msra.mxu0 %v688
        %708 = vmatprep.subr.bf16.mxu0 0
        %709 = vmatpush1.bf16.msra.mxu0 %v689
        %710 = vmatprep.subr.bf16.mxu0 0
        %711 = vmatpush1.bf16.msra.mxu0 %v690
        %712 = vmatprep.subr.bf16.mxu0 0
        %713 = vmatpush1.bf16.msra.mxu0 %v691
        %714 = vmatprep.subr.bf16.mxu0 0
        %715 = vmatpush1.bf16.msra.mxu0 %v692
        %716 = vmatprep.subr.bf16.mxu0 0
        %717 = vmatpush1.bf16.msra.mxu0 %v693
        %718 = vmatprep.subr.bf16.mxu0 0
        %719 = vmatpush1.bf16.msra.mxu0 0
        %720 = vmatprep.subr.bf16.mxu0 0
        %721 = vmatpush1.bf16.msra.mxu0 0
        %722 = vmatprep.subr.bf16.mxu0 0
        %723 = vmatpush1.bf16.msra.mxu0 0
        %724 = vmatprep.subr.bf16.mxu0 0
        %725 = vmatpush1.bf16.msra.mxu0 0
        %726 = vmatprep.subr.bf16.mxu0 0
        %727 = vmatpush1.bf16.msra.mxu0 0
        %728 = vmatprep.subr.bf16.mxu0 0
        %729 = vmatpush1.bf16.msra.mxu0 0
        %730 = vmatprep.subr.bf16.mxu0 0
        %731 = vmatpush1.bf16.msra.mxu0 0
        %732 = vmatprep.subr.bf16.mxu0 0
        %733 = vmatpush1.bf16.msra.mxu0 0
        %734 = vmatprep.mubr.bf16.mxu0 0
        %735 = vmatmul.mubr.bf16.gmra.mrb[0].mxu0 %v620
        %v736 = vpop.f32.mrb[0].mxu0
        %v737 = vadd.f32 %v652, %v736
        %v738 = vpop.f32.mrb[0].mxu0
        %v739 = vpop.f32.mrb[0].mxu0
        %v740 = vadd.f32 %v652, %v739
        %v741 = vpop.f32.mrb[0].mxu0
        %742 = vmatprep.mubr.bf16.mxu0 0
        %743 = vmatmul.mubr.bf16.gmra.mrb[0].mxu0 %v623
        %v744 = vpop.f32.mrb[0].mxu0
        %v745 = vadd.f32 %v652, %v744
        %v746 = vpop.f32.mrb[0].mxu0
        %v747 = vpop.f32.mrb[0].mxu0
        %v748 = vadd.f32 %v652, %v747
        %v749 = vpop.f32.mrb[0].mxu0
        %750 = vmatprep.mubr.bf16.mxu0 0
        %751 = vmatmul.mubr.bf16.gmra.mrb[0].mxu0 %v626
        %v752 = vpop.f32.mrb[0].mxu0
        %v753 = vadd.f32 %v652, %v752
        %v754 = vpop.f32.mrb[0].mxu0
        %v755 = vpop.f32.mrb[0].mxu0
        %v756 = vadd.f32 %v652, %v755
        %v757 = vpop.f32.mrb[0].mxu0
        %758 = vmatprep.mubr.bf16.mxu0 0
        %759 = vmatmul.mubr.bf16.gmra.mrb[0].mxu0 %v629
        %v760 = vpop.f32.mrb[0].mxu0
        %v761 = vadd.f32 %v652, %v760
        %v762 = vpop.f32.mrb[0].mxu0
        %v763 = vpop.f32.mrb[0].mxu0
        %v764 = vadd.f32 %v652, %v763
        %v765 = vpop.f32.mrb[0].mxu0
        %766 = vdwg.mxu0
        %v767 = vmax.f32 %v737, 0.0
        %v768 = vmax.f32 %v740, 0.0
        %v769 = vmax.f32 %v745, 0.0
        %v770 = vmax.f32 %v748, 0.0
        %v771 = vmax.f32 %v753, 0.0
        %v772 = vmax.f32 %v756, 0.0
        %v773 = vmax.f32 %v761, 0.0
        %v774 = vmax.f32 %v764, 0.0
        %775 = vst.msk [vmem:[%s339 + $0x1] sm:$0xff] %vm332, %v767
        %776 = vst.msk [vmem:[%s339 + $0x11] sm:$0xff] %vm332, %v768
        %777 = vst.msk [vmem:[%s339 + $0x21] sm:$0xff] %vm332, %v769
        %778 = vst.msk [vmem:[%s339 + $0x31] sm:$0xff] %vm332, %v770
        %779 = vst.msk [vmem:[%s339 + $0x41] sm:$0xff] %vm332, %v771
        %780 = vst.msk [vmem:[%s339 + $0x51] sm:$0xff] %vm332, %v772
        %781 = vst.msk [vmem:[%s339 + $0x61] sm:$0xff] %vm332, %v773
        %782 = vst.msk [vmem:[%s339 + $0x71] sm:$0xff] %vm332, %v774
        %v783 = vld [vmem:[#allocation2] sm:$0xff]
        %v784 = vld [vmem:[#allocation2 + $0x10] sm:$0xff]
        %v785 = vld [vmem:[#allocation2 + $0x20] sm:$0xff]
        %v786 = vld [vmem:[#allocation2 + $0x30] sm:$0xff]
        %v787 = vld [vmem:[#allocation2 + $0x40] sm:$0xff]
        %v788 = vld [vmem:[#allocation2 + $0x50] sm:$0xff]
        %v789 = vld [vmem:[#allocation2 + $0x60] sm:$0xff]
        %v790 = vld [vmem:[#allocation2 + $0x70] sm:$0xff]
        %v791 = vld [vmem:[#allocation2 + $0x1] sm:$0xff]
        %v792 = vld [vmem:[#allocation2 + $0x11] sm:$0xff]
        %v793 = vld [vmem:[#allocation2 + $0x21] sm:$0xff]
        %v794 = vld [vmem:[#allocation2 + $0x31] sm:$0xff]
        %v795 = vld [vmem:[#allocation2 + $0x41] sm:$0xff]
        %v796 = vld [vmem:[#allocation2 + $0x51] sm:$0xff]
        %v797 = vld [vmem:[#allocation2 + $0x61] sm:$0xff]
        %v798 = vld [vmem:[#allocation2 + $0x71] sm:$0xff]
        %v799 = vld [vmem:[#allocation2 + $0x2] sm:$0xff]
        %v800 = vld [vmem:[#allocation2 + $0x12] sm:$0xff]
        %v801 = vld [vmem:[#allocation2 + $0x22] sm:$0xff]
        %v802 = vld [vmem:[#allocation2 + $0x32] sm:$0xff]
        %v803 = vld [vmem:[#allocation2 + $0x42] sm:$0xff]
        %v804 = vld [vmem:[#allocation2 + $0x52] sm:$0xff]
        %v805 = vld [vmem:[#allocation2 + $0x62] sm:$0xff]
        %v806 = vld [vmem:[#allocation2 + $0x72] sm:$0xff]
        %v807 = vld [vmem:[%s339] sm:$0xff]
        %v808 = vld [vmem:[%s339 + $0x10] sm:$0xff]
        %v809 = vld [vmem:[%s339 + $0x20] sm:$0xff]
        %v810 = vld [vmem:[%s339 + $0x30] sm:$0xff]
        %v811 = vld [vmem:[%s339 + $0x40] sm:$0xff]
        %v812 = vld [vmem:[%s339 + $0x50] sm:$0xff]
        %v813 = vld [vmem:[%s339 + $0x60] sm:$0xff]
        %v814 = vld [vmem:[%s339 + $0x70] sm:$0xff]
        %v815 = vld [vmem:[%s339 + $0x1] sm:$0xff]
        %v816 = vld [vmem:[%s339 + $0x11] sm:$0xff]
        %v817 = vld [vmem:[%s339 + $0x21] sm:$0xff]
        %v818 = vld [vmem:[%s339 + $0x31] sm:$0xff]
        %v819 = vld [vmem:[%s339 + $0x41] sm:$0xff]
        %v820 = vld [vmem:[%s339 + $0x51] sm:$0xff]
        %v821 = vld [vmem:[%s339 + $0x61] sm:$0xff]
        %v822 = vld [vmem:[%s339 + $0x71] sm:$0xff]
        %v823 = vld [vmem:[%s339 + $0x2] sm:$0xff]
        %v824 = vld [vmem:[%s339 + $0x12] sm:$0xff]
        %v825 = vld [vmem:[%s339 + $0x22] sm:$0xff]
        %v826 = vld [vmem:[%s339 + $0x32] sm:$0xff]
        %v827 = vld [vmem:[%s339 + $0x42] sm:$0xff]
        %v828 = vld [vmem:[%s339 + $0x52] sm:$0xff]
        %v829 = vld [vmem:[%s339 + $0x62] sm:$0xff]
        %v830 = vld [vmem:[%s339 + $0x72] sm:$0xff]
        %s831 = scalar_lea.vmem [#allocation2], 32
        %v832 = vld [vmem:[%s831] sm:$0xff]
        %v833 = vld [vmem:[%s831 + $0x10] sm:$0xff]
        %v834 = vld [vmem:[%s831 + $0x20] sm:$0xff]
        %v835 = vld [vmem:[%s831 + $0x30] sm:$0xff]
        %v836 = vld [vmem:[%s831 + $0x40] sm:$0xff]
        %v837 = vld [vmem:[%s831 + $0x50] sm:$0xff]
        %v838 = vld [vmem:[%s831 + $0x60] sm:$0xff]
        %v839 = vld [vmem:[%s831 + $0x70] sm:$0xff]
        %v840 = vld [vmem:[%s831 + $0x1] sm:$0xff]
        %v841 = vld [vmem:[%s831 + $0x11] sm:$0xff]
        %v842 = vld [vmem:[%s831 + $0x21] sm:$0xff]
        %v843 = vld [vmem:[%s831 + $0x31] sm:$0xff]
        %v844 = vld [vmem:[%s831 + $0x41] sm:$0xff]
        %v845 = vld [vmem:[%s831 + $0x51] sm:$0xff]
        %v846 = vld [vmem:[%s831 + $0x61] sm:$0xff]
        %v847 = vld [vmem:[%s831 + $0x71] sm:$0xff]
        %v848 = vld [vmem:[%s831 + $0x2] sm:$0xff]
        %v849 = vld [vmem:[%s831 + $0x12] sm:$0xff]
        %v850 = vld [vmem:[%s831 + $0x22] sm:$0xff]
        %v851 = vld [vmem:[%s831 + $0x32] sm:$0xff]
        %v852 = vld [vmem:[%s831 + $0x42] sm:$0xff]
        %v853 = vld [vmem:[%s831 + $0x52] sm:$0xff]
        %v854 = vld [vmem:[%s831 + $0x62] sm:$0xff]
        %v855 = vld [vmem:[%s831 + $0x72] sm:$0xff]
        %864 = vrot.lane.b32.xlu0 %v791, 8
        %v865 = vpop.permute.xlu0 %864
        %866 = vrot.lane.b32.xlu0 %v792, 8
        %v867 = vpop.permute.xlu0 %866
        %868 = vrot.lane.b32.xlu0 %v793, 8
        %v869 = vpop.permute.xlu0 %868
        %870 = vrot.lane.b32.xlu0 %v794, 8
        %v871 = vpop.permute.xlu0 %870
        %872 = vrot.lane.b32.xlu0 %v795, 8
        %v873 = vpop.permute.xlu0 %872
        %874 = vrot.lane.b32.xlu0 %v796, 8
        %v875 = vpop.permute.xlu0 %874
        %876 = vrot.lane.b32.xlu0 %v797, 8
        %v877 = vpop.permute.xlu0 %876
        %878 = vrot.lane.b32.xlu0 %v798, 8
        %v879 = vpop.permute.xlu0 %878
        %896 = vrot.lane.b32.xlu0 %v799, 16
        %v897 = vpop.permute.xlu0 %896
        %898 = vrot.lane.b32.xlu0 %v800, 16
        %v899 = vpop.permute.xlu0 %898
        %900 = vrot.lane.b32.xlu0 %v801, 16
        %v901 = vpop.permute.xlu0 %900
        %902 = vrot.lane.b32.xlu0 %v802, 16
        %v903 = vpop.permute.xlu0 %902
        %904 = vrot.lane.b32.xlu0 %v803, 16
        %v905 = vpop.permute.xlu0 %904
        %906 = vrot.lane.b32.xlu0 %v804, 16
        %v907 = vpop.permute.xlu0 %906
        %908 = vrot.lane.b32.xlu0 %v805, 16
        %v909 = vpop.permute.xlu0 %908
        %910 = vrot.lane.b32.xlu0 %v806, 16
        %v911 = vpop.permute.xlu0 %910
        %928 = vrot.lane.b32.xlu0 %v807, 24
        %v929 = vpop.permute.xlu0 %928
        %930 = vrot.lane.b32.xlu0 %v808, 24
        %v931 = vpop.permute.xlu0 %930
        %932 = vrot.lane.b32.xlu0 %v809, 24
        %v933 = vpop.permute.xlu0 %932
        %934 = vrot.lane.b32.xlu0 %v810, 24
        %v935 = vpop.permute.xlu0 %934
        %936 = vrot.lane.b32.xlu0 %v811, 24
        %v937 = vpop.permute.xlu0 %936
        %938 = vrot.lane.b32.xlu0 %v812, 24
        %v939 = vpop.permute.xlu0 %938
        %940 = vrot.lane.b32.xlu0 %v813, 24
        %v941 = vpop.permute.xlu0 %940
        %942 = vrot.lane.b32.xlu0 %v814, 24
        %v943 = vpop.permute.xlu0 %942
        %960 = vrot.lane.b32.xlu0 %v815, 32
        %v961 = vpop.permute.xlu0 %960
        %962 = vrot.lane.b32.xlu0 %v816, 32
        %v963 = vpop.permute.xlu0 %962
        %964 = vrot.lane.b32.xlu0 %v817, 32
        %v965 = vpop.permute.xlu0 %964
        %966 = vrot.lane.b32.xlu0 %v818, 32
        %v967 = vpop.permute.xlu0 %966
        %968 = vrot.lane.b32.xlu0 %v819, 32
        %v969 = vpop.permute.xlu0 %968
        %970 = vrot.lane.b32.xlu0 %v820, 32
        %v971 = vpop.permute.xlu0 %970
        %972 = vrot.lane.b32.xlu0 %v821, 32
        %v973 = vpop.permute.xlu0 %972
        %974 = vrot.lane.b32.xlu0 %v822, 32
        %v975 = vpop.permute.xlu0 %974
        %992 = vrot.lane.b32.xlu0 %v823, 40
        %v993 = vpop.permute.xlu0 %992
        %994 = vrot.lane.b32.xlu0 %v824, 40
        %v995 = vpop.permute.xlu0 %994
        %996 = vrot.lane.b32.xlu0 %v825, 40
        %v997 = vpop.permute.xlu0 %996
        %998 = vrot.lane.b32.xlu0 %v826, 40
        %v999 = vpop.permute.xlu0 %998
        %1000 = vrot.lane.b32.xlu0 %v827, 40
        %v1001 = vpop.permute.xlu0 %1000
        %1002 = vrot.lane.b32.xlu0 %v828, 40
        %v1003 = vpop.permute.xlu0 %1002
        %1004 = vrot.lane.b32.xlu0 %v829, 40
        %v1005 = vpop.permute.xlu0 %1004
        %1006 = vrot.lane.b32.xlu0 %v830, 40
        %v1007 = vpop.permute.xlu0 %1006
        %1024 = vrot.lane.b32.xlu0 %v832, 48
        %v1025 = vpop.permute.xlu0 %1024
        %1026 = vrot.lane.b32.xlu0 %v833, 48
        %v1027 = vpop.permute.xlu0 %1026
        %1028 = vrot.lane.b32.xlu0 %v834, 48
        %v1029 = vpop.permute.xlu0 %1028
        %1030 = vrot.lane.b32.xlu0 %v835, 48
        %v1031 = vpop.permute.xlu0 %1030
        %1032 = vrot.lane.b32.xlu0 %v836, 48
        %v1033 = vpop.permute.xlu0 %1032
        %1034 = vrot.lane.b32.xlu0 %v837, 48
        %v1035 = vpop.permute.xlu0 %1034
        %1036 = vrot.lane.b32.xlu0 %v838, 48
        %v1037 = vpop.permute.xlu0 %1036
        %1038 = vrot.lane.b32.xlu0 %v839, 48
        %v1039 = vpop.permute.xlu0 %1038
        %1056 = vrot.lane.b32.xlu0 %v840, 56
        %v1057 = vpop.permute.xlu0 %1056
        %1058 = vrot.lane.b32.xlu0 %v841, 56
        %v1059 = vpop.permute.xlu0 %1058
        %1060 = vrot.lane.b32.xlu0 %v842, 56
        %v1061 = vpop.permute.xlu0 %1060
        %1062 = vrot.lane.b32.xlu0 %v843, 56
        %v1063 = vpop.permute.xlu0 %1062
        %1064 = vrot.lane.b32.xlu0 %v844, 56
        %v1065 = vpop.permute.xlu0 %1064
        %1066 = vrot.lane.b32.xlu0 %v845, 56
        %v1067 = vpop.permute.xlu0 %1066
        %1068 = vrot.lane.b32.xlu0 %v846, 56
        %v1069 = vpop.permute.xlu0 %1068
        %1070 = vrot.lane.b32.xlu0 %v847, 56
        %v1071 = vpop.permute.xlu0 %1070
        %1088 = vrot.lane.b32.xlu0 %v848, 64
        %v1089 = vpop.permute.xlu0 %1088
        %1090 = vrot.lane.b32.xlu0 %v849, 64
        %v1091 = vpop.permute.xlu0 %1090
        %1092 = vrot.lane.b32.xlu0 %v850, 64
        %v1093 = vpop.permute.xlu0 %1092
        %1094 = vrot.lane.b32.xlu0 %v851, 64
        %v1095 = vpop.permute.xlu0 %1094
        %1096 = vrot.lane.b32.xlu0 %v852, 64
        %v1097 = vpop.permute.xlu0 %1096
        %1098 = vrot.lane.b32.xlu0 %v853, 64
        %v1099 = vpop.permute.xlu0 %1098
        %1100 = vrot.lane.b32.xlu0 %v854, 64
        %v1101 = vpop.permute.xlu0 %1100
        %1102 = vrot.lane.b32.xlu0 %v855, 64
        %v1103 = vpop.permute.xlu0 %1102
        %v1112 = vsel %vm332, %v783, %v865
        %v1113 = vsel %vm332, %v784, %v867
        %v1114 = vsel %vm332, %v785, %v869
        %v1115 = vsel %vm332, %v786, %v871
        %v1116 = vsel %vm332, %v787, %v873
        %v1117 = vsel %vm332, %v788, %v875
        %v1118 = vsel %vm332, %v789, %v877
        %v1119 = vsel %vm332, %v790, %v879
        %v1120 = vsel %vm357, %v1112, %v897
        %v1121 = vsel %vm357, %v1113, %v899
        %v1122 = vsel %vm357, %v1114, %v901
        %v1123 = vsel %vm357, %v1115, %v903
        %v1124 = vsel %vm357, %v1116, %v905
        %v1125 = vsel %vm357, %v1117, %v907
        %v1126 = vsel %vm357, %v1118, %v909
        %v1127 = vsel %vm357, %v1119, %v911
        %vm1128 = vcmask 195584
        %v1129 = vsel %vm1128, %v1120, %v929
        %v1130 = vsel %vm1128, %v1121, %v931
        %v1131 = vsel %vm1128, %v1122, %v933
        %v1132 = vsel %vm1128, %v1123, %v935
        %v1133 = vsel %vm1128, %v1124, %v937
        %v1134 = vsel %vm1128, %v1125, %v939
        %v1135 = vsel %vm1128, %v1126, %v941
        %v1136 = vsel %vm1128, %v1127, %v943
        %v1137 = vsel %vm596, %v1129, %v961
        %v1138 = vsel %vm596, %v1130, %v963
        %v1139 = vsel %vm596, %v1131, %v965
        %v1140 = vsel %vm596, %v1132, %v967
        %v1141 = vsel %vm596, %v1133, %v969
        %v1142 = vsel %vm596, %v1134, %v971
        %v1143 = vsel %vm596, %v1135, %v973
        %v1144 = vsel %vm596, %v1136, %v975
        %vm1145 = vcmask 326656
        %v1146 = vsel %vm1145, %v1137, %v993
        %v1147 = vsel %vm1145, %v1138, %v995
        %v1148 = vsel %vm1145, %v1139, %v997
        %v1149 = vsel %vm1145, %v1140, %v999
        %v1150 = vsel %vm1145, %v1141, %v1001
        %v1151 = vsel %vm1145, %v1142, %v1003
        %v1152 = vsel %vm1145, %v1143, %v1005
        %v1153 = vsel %vm1145, %v1144, %v1007
        %vm1154 = vcmask 392192
        %v1155 = vsel %vm1154, %v1146, %v1025
        %v1156 = vsel %vm1154, %v1147, %v1027
        %v1157 = vsel %vm1154, %v1148, %v1029
        %v1158 = vsel %vm1154, %v1149, %v1031
        %v1159 = vsel %vm1154, %v1150, %v1033
        %v1160 = vsel %vm1154, %v1151, %v1035
        %v1161 = vsel %vm1154, %v1152, %v1037
        %v1162 = vsel %vm1154, %v1153, %v1039
        %vm1163 = vcmask 457728
        %v1164 = vsel %vm1163, %v1155, %v1057
        %v1165 = vsel %vm1163, %v1156, %v1059
        %v1166 = vsel %vm1163, %v1157, %v1061
        %v1167 = vsel %vm1163, %v1158, %v1063
        %v1168 = vsel %vm1163, %v1159, %v1065
        %v1169 = vsel %vm1163, %v1160, %v1067
        %v1170 = vsel %vm1163, %v1161, %v1069
        %v1171 = vsel %vm1163, %v1162, %v1071
        %v1172 = vsel %vm609, %v1164, %v1089
        %v1173 = vsel %vm609, %v1165, %v1091
        %v1174 = vsel %vm609, %v1166, %v1093
        %v1175 = vsel %vm609, %v1167, %v1095
        %v1176 = vsel %vm609, %v1168, %v1097
        %v1177 = vsel %vm609, %v1169, %v1099
        %v1178 = vsel %vm609, %v1170, %v1101
        %v1179 = vsel %vm609, %v1171, %v1103
        %v1180 = vpack.c.bf16 %v1173, %v1172
        %v1181 = vpack.c.bf16 %v1175, %v1174
        %v1182 = vpack.c.bf16 %v1177, %v1176
        %v1183 = vpack.c.bf16 %v1179, %v1178
        %v1184 = vld [vmem:[%s3] sm:$0xf]
        %v1185 = vld [vmem:[%s3 + $0x4] sm:$0xf]
        %v1186 = vld [vmem:[%s3 + $0x8] sm:$0xf]
        %v1187 = vld [vmem:[%s3 + $0xc] sm:$0xf]
        %v1188 = vld [vmem:[%s3 + $0x10] sm:$0xf]
        %v1189 = vld [vmem:[%s3 + $0x14] sm:$0xf]
        %v1190 = vld [vmem:[%s3 + $0x18] sm:$0xf]
        %v1191 = vld [vmem:[%s3 + $0x1c] sm:$0xf]
        %v1192 = vld [vmem:[%s3 + $0x20] sm:$0xf]
        %v1193 = vld [vmem:[%s4] sm:$0x1]
        %v1195 = vlaneseq
        %v1196 = vshrl.u32 %v1195, 7
        %v1197 = vsub.s32 0, %v1196
        %v1198 = vrot.slane %v1193, %v1197
        %v1209 = vunpack.c.l.b16 %v1184
        %v1210 = vunpack.c.l.b16 %v1185
        %v1211 = vunpack.c.l.b16 %v1186
        %v1212 = vunpack.c.l.b16 %v1187
        %v1213 = vunpack.c.l.b16 %v1188
        %v1214 = vunpack.c.l.b16 %v1189
        %v1215 = vunpack.c.l.b16 %v1190
        %v1216 = vunpack.c.l.b16 %v1191
        %v1217 = vunpack.c.l.b16 %v1192
        %v1218 = vpack.c.b16 %v1210, %v1209
        %v1219 = vpack.c.b16 %v1212, %v1211
        %v1220 = vpack.c.b16 %v1214, %v1213
        %v1221 = vpack.c.b16 %v1216, %v1215
        %v1222 = vpack.c.b16 %v1217, %v1217
        %vm1227 = vcmask 588800
        %v1229 = vsel %vm1227, %v1180, 0
        %v1232 = vsel %vm1227, %v1181, 0
        %v1235 = vsel %vm1227, %v1182, 0
        %v1238 = vsel %vm1227, %v1183, 0
        %vm1240 = vcmask 1043456
        %v1242 = vsel %vm1240, %v1222, 0
        %1244 = vmatprep.subr.bf16.mxu0 0
        %1245 = vmatpush1.bf16.msra.mxu0 %v1218
        %1246 = vmatprep.subr.bf16.mxu0 0
        %1247 = vmatpush1.bf16.msra.mxu0 %v1219
        %1248 = vmatprep.subr.bf16.mxu0 0
        %1249 = vmatpush1.bf16.msra.mxu0 %v1220
        %1250 = vmatprep.subr.bf16.mxu0 0
        %1251 = vmatpush1.bf16.msra.mxu0 %v1221
        %1252 = vmatprep.subr.bf16.mxu0 0
        %1253 = vmatpush1.bf16.msra.mxu0 %v1242
        %1254 = vmatprep.subr.bf16.mxu0 0
        %1255 = vmatpush1.bf16.msra.mxu0 0
        %1256 = vmatprep.subr.bf16.mxu0 0
        %1257 = vmatpush1.bf16.msra.mxu0 0
        %1258 = vmatprep.subr.bf16.mxu0 0
        %1259 = vmatpush1.bf16.msra.mxu0 0
        %1260 = vmatprep.subr.bf16.mxu0 0
        %1261 = vmatpush1.bf16.msra.mxu0 0
        %1262 = vmatprep.subr.bf16.mxu0 0
        %1263 = vmatpush1.bf16.msra.mxu0 0
        %1264 = vmatprep.subr.bf16.mxu0 0
        %1265 = vmatpush1.bf16.msra.mxu0 0
        %1266 = vmatprep.subr.bf16.mxu0 0
        %1267 = vmatpush1.bf16.msra.mxu0 0
        %1268 = vmatprep.subr.bf16.mxu0 0
        %1269 = vmatpush1.bf16.msra.mxu0 0
        %1270 = vmatprep.subr.bf16.mxu0 0
        %1271 = vmatpush1.bf16.msra.mxu0 0
        %1272 = vmatprep.subr.bf16.mxu0 0
        %1273 = vmatpush1.bf16.msra.mxu0 0
        %1274 = vmatprep.subr.bf16.mxu0 0
        %1275 = vmatpush1.bf16.msra.mxu0 0
        %1276 = vmatprep.mubr.bf16.mxu0 0
        %1277 = vmatmul.mubr.bf16.gmra.mrb[0].mxu0 %v1229
        %v1278 = vpop.f32.mrb[0].mxu0
        %v1279 = vadd.f32 %v1198, %v1278
        %v1280 = vpop.f32.mrb[0].mxu0
        %v1281 = vpop.f32.mrb[0].mxu0
        %v1282 = vadd.f32 %v1198, %v1281
        %v1283 = vpop.f32.mrb[0].mxu0
        %1284 = vmatprep.mubr.bf16.mxu0 0
        %1285 = vmatmul.mubr.bf16.gmra.mrb[0].mxu0 %v1232
        %v1286 = vpop.f32.mrb[0].mxu0
        %v1287 = vadd.f32 %v1198, %v1286
        %v1288 = vpop.f32.mrb[0].mxu0
        %v1289 = vpop.f32.mrb[0].mxu0
        %v1290 = vadd.f32 %v1198, %v1289
        %v1291 = vpop.f32.mrb[0].mxu0
        %1292 = vmatprep.mubr.bf16.mxu0 0
        %1293 = vmatmul.mubr.bf16.gmra.mrb[0].mxu0 %v1235
        %v1294 = vpop.f32.mrb[0].mxu0
        %v1295 = vadd.f32 %v1198, %v1294
        %v1296 = vpop.f32.mrb[0].mxu0
        %v1297 = vpop.f32.mrb[0].mxu0
        %v1298 = vadd.f32 %v1198, %v1297
        %v1299 = vpop.f32.mrb[0].mxu0
        %1300 = vmatprep.mubr.bf16.mxu0 0
        %1301 = vmatmul.mubr.bf16.gmra.mrb[0].mxu0 %v1238
        %v1302 = vpop.f32.mrb[0].mxu0
        %v1303 = vadd.f32 %v1198, %v1302
        %v1304 = vpop.f32.mrb[0].mxu0
        %v1305 = vpop.f32.mrb[0].mxu0
        %v1306 = vadd.f32 %v1198, %v1305
        %v1307 = vpop.f32.mrb[0].mxu0
        %1308 = vdwg.mxu0
        %v1309 = vmax.f32 %v1279, 0.0
        %v1310 = vmax.f32 %v1282, 0.0
        %v1311 = vmax.f32 %v1287, 0.0
        %v1312 = vmax.f32 %v1290, 0.0
        %v1313 = vmax.f32 %v1295, 0.0
        %v1314 = vmax.f32 %v1298, 0.0
        %v1315 = vmax.f32 %v1303, 0.0
        %v1316 = vmax.f32 %v1306, 0.0
        %1317 = vst.msk [vmem:[%s364 + $0x1] sm:$0xff] %vm357, %v1309
        %1318 = vst.msk [vmem:[%s364 + $0x11] sm:$0xff] %vm357, %v1310
        %1319 = vst.msk [vmem:[%s364 + $0x21] sm:$0xff] %vm357, %v1311
        %1320 = vst.msk [vmem:[%s364 + $0x31] sm:$0xff] %vm357, %v1312
        %1321 = vst.msk [vmem:[%s364 + $0x41] sm:$0xff] %vm357, %v1313
        %1322 = vst.msk [vmem:[%s364 + $0x51] sm:$0xff] %vm357, %v1314
        %1323 = vst.msk [vmem:[%s364 + $0x61] sm:$0xff] %vm357, %v1315
        %1324 = vst.msk [vmem:[%s364 + $0x71] sm:$0xff] %vm357, %v1316
        %v1325 = vld [vmem:[#allocation3] sm:$0xff]
        %v1326 = vld [vmem:[#allocation3 + $0x10] sm:$0xff]
        %v1327 = vld [vmem:[#allocation3 + $0x20] sm:$0xff]
        %v1328 = vld [vmem:[#allocation3 + $0x30] sm:$0xff]
        %v1329 = vld [vmem:[#allocation3 + $0x40] sm:$0xff]
        %v1330 = vld [vmem:[#allocation3 + $0x50] sm:$0xff]
        %v1331 = vld [vmem:[#allocation3 + $0x60] sm:$0xff]
        %v1332 = vld [vmem:[#allocation3 + $0x70] sm:$0xff]
        %v1333 = vld [vmem:[#allocation3 + $0x1] sm:$0xff]
        %v1334 = vld [vmem:[#allocation3 + $0x11] sm:$0xff]
        %v1335 = vld [vmem:[#allocation3 + $0x21] sm:$0xff]
        %v1336 = vld [vmem:[#allocation3 + $0x31] sm:$0xff]
        %v1337 = vld [vmem:[#allocation3 + $0x41] sm:$0xff]
        %v1338 = vld [vmem:[#allocation3 + $0x51] sm:$0xff]
        %v1339 = vld [vmem:[#allocation3 + $0x61] sm:$0xff]
        %v1340 = vld [vmem:[#allocation3 + $0x71] sm:$0xff]
        %v1341 = vld [vmem:[#allocation3 + $0x2] sm:$0xff]
        %v1342 = vld [vmem:[#allocation3 + $0x12] sm:$0xff]
        %v1343 = vld [vmem:[#allocation3 + $0x22] sm:$0xff]
        %v1344 = vld [vmem:[#allocation3 + $0x32] sm:$0xff]
        %v1345 = vld [vmem:[#allocation3 + $0x42] sm:$0xff]
        %v1346 = vld [vmem:[#allocation3 + $0x52] sm:$0xff]
        %v1347 = vld [vmem:[#allocation3 + $0x62] sm:$0xff]
        %v1348 = vld [vmem:[#allocation3 + $0x72] sm:$0xff]
        %v1349 = vld [vmem:[%s364] sm:$0xff]
        %v1350 = vld [vmem:[%s364 + $0x10] sm:$0xff]
        %v1351 = vld [vmem:[%s364 + $0x20] sm:$0xff]
        %v1352 = vld [vmem:[%s364 + $0x30] sm:$0xff]
        %v1353 = vld [vmem:[%s364 + $0x40] sm:$0xff]
        %v1354 = vld [vmem:[%s364 + $0x50] sm:$0xff]
        %v1355 = vld [vmem:[%s364 + $0x60] sm:$0xff]
        %v1356 = vld [vmem:[%s364 + $0x70] sm:$0xff]
        %v1357 = vld [vmem:[%s364 + $0x1] sm:$0xff]
        %v1358 = vld [vmem:[%s364 + $0x11] sm:$0xff]
        %v1359 = vld [vmem:[%s364 + $0x21] sm:$0xff]
        %v1360 = vld [vmem:[%s364 + $0x31] sm:$0xff]
        %v1361 = vld [vmem:[%s364 + $0x41] sm:$0xff]
        %v1362 = vld [vmem:[%s364 + $0x51] sm:$0xff]
        %v1363 = vld [vmem:[%s364 + $0x61] sm:$0xff]
        %v1364 = vld [vmem:[%s364 + $0x71] sm:$0xff]
        %v1365 = vld [vmem:[%s364 + $0x2] sm:$0xff]
        %v1366 = vld [vmem:[%s364 + $0x12] sm:$0xff]
        %v1367 = vld [vmem:[%s364 + $0x22] sm:$0xff]
        %v1368 = vld [vmem:[%s364 + $0x32] sm:$0xff]
        %v1369 = vld [vmem:[%s364 + $0x42] sm:$0xff]
        %v1370 = vld [vmem:[%s364 + $0x52] sm:$0xff]
        %v1371 = vld [vmem:[%s364 + $0x62] sm:$0xff]
        %v1372 = vld [vmem:[%s364 + $0x72] sm:$0xff]
        %s1373 = scalar_lea.vmem [#allocation3], 32
        %v1374 = vld [vmem:[%s1373] sm:$0xff]
        %v1375 = vld [vmem:[%s1373 + $0x10] sm:$0xff]
        %v1376 = vld [vmem:[%s1373 + $0x20] sm:$0xff]
        %v1377 = vld [vmem:[%s1373 + $0x30] sm:$0xff]
        %v1378 = vld [vmem:[%s1373 + $0x40] sm:$0xff]
        %v1379 = vld [vmem:[%s1373 + $0x50] sm:$0xff]
        %v1380 = vld [vmem:[%s1373 + $0x60] sm:$0xff]
        %v1381 = vld [vmem:[%s1373 + $0x70] sm:$0xff]
        %v1382 = vld [vmem:[%s1373 + $0x1] sm:$0xff]
        %v1383 = vld [vmem:[%s1373 + $0x11] sm:$0xff]
        %v1384 = vld [vmem:[%s1373 + $0x21] sm:$0xff]
        %v1385 = vld [vmem:[%s1373 + $0x31] sm:$0xff]
        %v1386 = vld [vmem:[%s1373 + $0x41] sm:$0xff]
        %v1387 = vld [vmem:[%s1373 + $0x51] sm:$0xff]
        %v1388 = vld [vmem:[%s1373 + $0x61] sm:$0xff]
        %v1389 = vld [vmem:[%s1373 + $0x71] sm:$0xff]
        %v1390 = vld [vmem:[%s1373 + $0x2] sm:$0xff]
        %v1391 = vld [vmem:[%s1373 + $0x12] sm:$0xff]
        %v1392 = vld [vmem:[%s1373 + $0x22] sm:$0xff]
        %v1393 = vld [vmem:[%s1373 + $0x32] sm:$0xff]
        %v1394 = vld [vmem:[%s1373 + $0x42] sm:$0xff]
        %v1395 = vld [vmem:[%s1373 + $0x52] sm:$0xff]
        %v1396 = vld [vmem:[%s1373 + $0x62] sm:$0xff]
        %v1397 = vld [vmem:[%s1373 + $0x72] sm:$0xff]
        %1406 = vrot.lane.b32.xlu0 %v1333, 16
        %v1407 = vpop.permute.xlu0 %1406
        %1408 = vrot.lane.b32.xlu0 %v1334, 16
        %v1409 = vpop.permute.xlu0 %1408
        %1410 = vrot.lane.b32.xlu0 %v1335, 16
        %v1411 = vpop.permute.xlu0 %1410
        %1412 = vrot.lane.b32.xlu0 %v1336, 16
        %v1413 = vpop.permute.xlu0 %1412
        %1414 = vrot.lane.b32.xlu0 %v1337, 16
        %v1415 = vpop.permute.xlu0 %1414
        %1416 = vrot.lane.b32.xlu0 %v1338, 16
        %v1417 = vpop.permute.xlu0 %1416
        %1418 = vrot.lane.b32.xlu0 %v1339, 16
        %v1419 = vpop.permute.xlu0 %1418
        %1420 = vrot.lane.b32.xlu0 %v1340, 16
        %v1421 = vpop.permute.xlu0 %1420
        %1438 = vrot.lane.b32.xlu0 %v1341, 32
        %v1439 = vpop.permute.xlu0 %1438
        %1440 = vrot.lane.b32.xlu0 %v1342, 32
        %v1441 = vpop.permute.xlu0 %1440
        %1442 = vrot.lane.b32.xlu0 %v1343, 32
        %v1443 = vpop.permute.xlu0 %1442
        %1444 = vrot.lane.b32.xlu0 %v1344, 32
        %v1445 = vpop.permute.xlu0 %1444
        %1446 = vrot.lane.b32.xlu0 %v1345, 32
        %v1447 = vpop.permute.xlu0 %1446
        %1448 = vrot.lane.b32.xlu0 %v1346, 32
        %v1449 = vpop.permute.xlu0 %1448
        %1450 = vrot.lane.b32.xlu0 %v1347, 32
        %v1451 = vpop.permute.xlu0 %1450
        %1452 = vrot.lane.b32.xlu0 %v1348, 32
        %v1453 = vpop.permute.xlu0 %1452
        %1470 = vrot.lane.b32.xlu0 %v1349, 48
        %v1471 = vpop.permute.xlu0 %1470
        %1472 = vrot.lane.b32.xlu0 %v1350, 48
        %v1473 = vpop.permute.xlu0 %1472
        %1474 = vrot.lane.b32.xlu0 %v1351, 48
        %v1475 = vpop.permute.xlu0 %1474
        %1476 = vrot.lane.b32.xlu0 %v1352, 48
        %v1477 = vpop.permute.xlu0 %1476
        %1478 = vrot.lane.b32.xlu0 %v1353, 48
        %v1479 = vpop.permute.xlu0 %1478
        %1480 = vrot.lane.b32.xlu0 %v1354, 48
        %v1481 = vpop.permute.xlu0 %1480
        %1482 = vrot.lane.b32.xlu0 %v1355, 48
        %v1483 = vpop.permute.xlu0 %1482
        %1484 = vrot.lane.b32.xlu0 %v1356, 48
        %v1485 = vpop.permute.xlu0 %1484
        %1502 = vrot.lane.b32.xlu0 %v1357, 64
        %v1503 = vpop.permute.xlu0 %1502
        %1504 = vrot.lane.b32.xlu0 %v1358, 64
        %v1505 = vpop.permute.xlu0 %1504
        %1506 = vrot.lane.b32.xlu0 %v1359, 64
        %v1507 = vpop.permute.xlu0 %1506
        %1508 = vrot.lane.b32.xlu0 %v1360, 64
        %v1509 = vpop.permute.xlu0 %1508
        %1510 = vrot.lane.b32.xlu0 %v1361, 64
        %v1511 = vpop.permute.xlu0 %1510
        %1512 = vrot.lane.b32.xlu0 %v1362, 64
        %v1513 = vpop.permute.xlu0 %1512
        %1514 = vrot.lane.b32.xlu0 %v1363, 64
        %v1515 = vpop.permute.xlu0 %1514
        %1516 = vrot.lane.b32.xlu0 %v1364, 64
        %v1517 = vpop.permute.xlu0 %1516
        %1534 = vrot.lane.b32.xlu0 %v1365, 80
        %v1535 = vpop.permute.xlu0 %1534
        %1536 = vrot.lane.b32.xlu0 %v1366, 80
        %v1537 = vpop.permute.xlu0 %1536
        %1538 = vrot.lane.b32.xlu0 %v1367, 80
        %v1539 = vpop.permute.xlu0 %1538
        %1540 = vrot.lane.b32.xlu0 %v1368, 80
        %v1541 = vpop.permute.xlu0 %1540
        %1542 = vrot.lane.b32.xlu0 %v1369, 80
        %v1543 = vpop.permute.xlu0 %1542
        %1544 = vrot.lane.b32.xlu0 %v1370, 80
        %v1545 = vpop.permute.xlu0 %1544
        %1546 = vrot.lane.b32.xlu0 %v1371, 80
        %v1547 = vpop.permute.xlu0 %1546
        %1548 = vrot.lane.b32.xlu0 %v1372, 80
        %v1549 = vpop.permute.xlu0 %1548
        %1566 = vrot.lane.b32.xlu0 %v1374, 96
        %v1567 = vpop.permute.xlu0 %1566
        %1568 = vrot.lane.b32.xlu0 %v1375, 96
        %v1569 = vpop.permute.xlu0 %1568
        %1570 = vrot.lane.b32.xlu0 %v1376, 96
        %v1571 = vpop.permute.xlu0 %1570
        %1572 = vrot.lane.b32.xlu0 %v1377, 96
        %v1573 = vpop.permute.xlu0 %1572
        %1574 = vrot.lane.b32.xlu0 %v1378, 96
        %v1575 = vpop.permute.xlu0 %1574
        %1576 = vrot.lane.b32.xlu0 %v1379, 96
        %v1577 = vpop.permute.xlu0 %1576
        %1578 = vrot.lane.b32.xlu0 %v1380, 96
        %v1579 = vpop.permute.xlu0 %1578
        %1580 = vrot.lane.b32.xlu0 %v1381, 96
        %v1581 = vpop.permute.xlu0 %1580
        %1598 = vrot.lane.b32.xlu0 %v1382, 112
        %v1599 = vpop.permute.xlu0 %1598
        %1600 = vrot.lane.b32.xlu0 %v1383, 112
        %v1601 = vpop.permute.xlu0 %1600
        %1602 = vrot.lane.b32.xlu0 %v1384, 112
        %v1603 = vpop.permute.xlu0 %1602
        %1604 = vrot.lane.b32.xlu0 %v1385, 112
        %v1605 = vpop.permute.xlu0 %1604
        %1606 = vrot.lane.b32.xlu0 %v1386, 112
        %v1607 = vpop.permute.xlu0 %1606
        %1608 = vrot.lane.b32.xlu0 %v1387, 112
        %v1609 = vpop.permute.xlu0 %1608
        %1610 = vrot.lane.b32.xlu0 %v1388, 112
        %v1611 = vpop.permute.xlu0 %1610
        %1612 = vrot.lane.b32.xlu0 %v1389, 112
        %v1613 = vpop.permute.xlu0 %1612
        %v1622 = vsel %vm357, %v1325, %v1407
        %v1623 = vsel %vm357, %v1326, %v1409
        %v1624 = vsel %vm357, %v1327, %v1411
        %v1625 = vsel %vm357, %v1328, %v1413
        %v1626 = vsel %vm357, %v1329, %v1415
        %v1627 = vsel %vm357, %v1330, %v1417
        %v1628 = vsel %vm357, %v1331, %v1419
        %v1629 = vsel %vm357, %v1332, %v1421
        %v1630 = vsel %vm596, %v1622, %v1439
        %v1631 = vsel %vm596, %v1623, %v1441
        %v1632 = vsel %vm596, %v1624, %v1443
        %v1633 = vsel %vm596, %v1625, %v1445
        %v1634 = vsel %vm596, %v1626, %v1447
        %v1635 = vsel %vm596, %v1627, %v1449
        %v1636 = vsel %vm596, %v1628, %v1451
        %v1637 = vsel %vm596, %v1629, %v1453
        %v1638 = vsel %vm1154, %v1630, %v1471
        %v1639 = vsel %vm1154, %v1631, %v1473
        %v1640 = vsel %vm1154, %v1632, %v1475
        %v1641 = vsel %vm1154, %v1633, %v1477
        %v1642 = vsel %vm1154, %v1634, %v1479
        %v1643 = vsel %vm1154, %v1635, %v1481
        %v1644 = vsel %vm1154, %v1636, %v1483
        %v1645 = vsel %vm1154, %v1637, %v1485
        %v1646 = vsel %vm609, %v1638, %v1503
        %v1647 = vsel %vm609, %v1639, %v1505
        %v1648 = vsel %vm609, %v1640, %v1507
        %v1649 = vsel %vm609, %v1641, %v1509
        %v1650 = vsel %vm609, %v1642, %v1511
        %v1651 = vsel %vm609, %v1643, %v1513
        %v1652 = vsel %vm609, %v1644, %v1515
        %v1653 = vsel %vm609, %v1645, %v1517
        %vm1654 = vcmask 654336
        %v1655 = vsel %vm1654, %v1646, %v1535
        %v1656 = vsel %vm1654, %v1647, %v1537
        %v1657 = vsel %vm1654, %v1648, %v1539
        %v1658 = vsel %vm1654, %v1649, %v1541
        %v1659 = vsel %vm1654, %v1650, %v1543
        %v1660 = vsel %vm1654, %v1651, %v1545
        %v1661 = vsel %vm1654, %v1652, %v1547
        %v1662 = vsel %vm1654, %v1653, %v1549
        %v1663 = vsel %vm618, %v1655, %v1567
        %v1664 = vsel %vm618, %v1656, %v1569
        %v1665 = vsel %vm618, %v1657, %v1571
        %v1666 = vsel %vm618, %v1658, %v1573
        %v1667 = vsel %vm618, %v1659, %v1575
        %v1668 = vsel %vm618, %v1660, %v1577
        %v1669 = vsel %vm618, %v1661, %v1579
        %v1670 = vsel %vm618, %v1662, %v1581
        %vm1671 = vcmask 916480
        %v1672 = vsel %vm1671, %v1663, %v1599
        %v1673 = vsel %vm1671, %v1664, %v1601
        %v1674 = vsel %vm1671, %v1665, %v1603
        %v1675 = vsel %vm1671, %v1666, %v1605
        %v1676 = vsel %vm1671, %v1667, %v1607
        %v1677 = vsel %vm1671, %v1668, %v1609
        %v1678 = vsel %vm1671, %v1669, %v1611
        %v1679 = vsel %vm1671, %v1670, %v1613
        %v1680 = vpack.c.bf16 %v1673, %v1672
        %v1681 = vpack.c.bf16 %v1391, %v1390
        %v1682 = vpack.c.bf16 %v1675, %v1674
        %v1683 = vpack.c.bf16 %v1393, %v1392
        %v1684 = vpack.c.bf16 %v1677, %v1676
        %v1685 = vpack.c.bf16 %v1395, %v1394
        %v1686 = vpack.c.bf16 %v1679, %v1678
        %v1687 = vpack.c.bf16 %v1397, %v1396
        %v1688 = vld [vmem:[%s5] sm:$0xf]
        %v1689 = vld [vmem:[%s5 + $0x4] sm:$0xf]
        %v1690 = vld [vmem:[%s5 + $0x8] sm:$0xf]
        %v1691 = vld [vmem:[%s5 + $0xc] sm:$0xf]
        %v1692 = vld [vmem:[%s5 + $0x10] sm:$0xf]
        %v1693 = vld [vmem:[%s5 + $0x14] sm:$0xf]
        %v1694 = vld [vmem:[%s5 + $0x18] sm:$0xf]
        %v1695 = vld [vmem:[%s5 + $0x1c] sm:$0xf]
        %v1696 = vld [vmem:[%s5 + $0x20] sm:$0xf]
        %v1697 = vld [vmem:[%s5 + $0x24] sm:$0xf]
        %v1698 = vld [vmem:[%s5 + $0x28] sm:$0xf]
        %v1699 = vld [vmem:[%s5 + $0x2c] sm:$0xf]
        %v1700 = vld [vmem:[%s5 + $0x30] sm:$0xf]
        %v1701 = vld [vmem:[%s5 + $0x34] sm:$0xf]
        %v1702 = vld [vmem:[%s5 + $0x38] sm:$0xf]
        %v1703 = vld [vmem:[%s5 + $0x3c] sm:$0xf]
        %v1704 = vld [vmem:[%s5 + $0x40] sm:$0xf]
        %v1705 = vld [vmem:[%s5 + $0x44] sm:$0xf]
        %v1706 = vld [vmem:[%s6] sm:$0x1]
        %v1708 = vlaneseq
        %v1709 = vshrl.u32 %v1708, 7
        %v1710 = vsub.s32 0, %v1709
        %v1711 = vrot.slane %v1706, %v1710
        %v1731 = vunpack.c.l.b16 %v1688
        %v1732 = vunpack.c.l.b16 %v1689
        %v1733 = vunpack.c.l.b16 %v1690
        %v1734 = vunpack.c.l.b16 %v1691
        %v1735 = vunpack.c.l.b16 %v1692
        %v1736 = vunpack.c.l.b16 %v1693
        %v1737 = vunpack.c.l.b16 %v1694
        %v1738 = vunpack.c.l.b16 %v1695
        %v1739 = vunpack.c.l.b16 %v1696
        %v1740 = vunpack.c.l.b16 %v1697
        %v1741 = vunpack.c.l.b16 %v1698
        %v1742 = vunpack.c.l.b16 %v1699
        %v1743 = vunpack.c.l.b16 %v1700
        %v1744 = vunpack.c.l.b16 %v1701
        %v1745 = vunpack.c.l.b16 %v1702
        %v1746 = vunpack.c.l.b16 %v1703
        %v1747 = vunpack.c.l.b16 %v1704
        %v1748 = vunpack.c.l.b16 %v1705
        %v1749 = vpack.c.b16 %v1732, %v1731
        %v1750 = vpack.c.b16 %v1734, %v1733
        %v1751 = vpack.c.b16 %v1736, %v1735
        %v1752 = vpack.c.b16 %v1738, %v1737
        %v1753 = vpack.c.b16 %v1740, %v1739
        %v1754 = vpack.c.b16 %v1742, %v1741
        %v1755 = vpack.c.b16 %v1744, %v1743
        %v1756 = vpack.c.b16 %v1746, %v1745
        %v1757 = vpack.c.b16 %v1748, %v1747
        %v1768 = vsel %vm357, %v1681, 0
        %v1771 = vsel %vm357, %v1683, 0
        %v1774 = vsel %vm357, %v1685, 0
        %v1777 = vsel %vm357, %v1687, 0
        %1779 = vmatprep.subr.bf16.mxu0 0
        %1780 = vmatpush1.bf16.msra.mxu0 %v1749
        %1781 = vmatprep.subr.bf16.mxu0 0
        %1782 = vmatpush1.bf16.msra.mxu0 %v1750
        %1783 = vmatprep.subr.bf16.mxu0 0
        %1784 = vmatpush1.bf16.msra.mxu0 %v1751
        %1785 = vmatprep.subr.bf16.mxu0 0
        %1786 = vmatpush1.bf16.msra.mxu0 %v1752
        %1787 = vmatprep.subr.bf16.mxu0 0
        %1788 = vmatpush1.bf16.msra.mxu0 %v1753
        %1789 = vmatprep.subr.bf16.mxu0 0
        %1790 = vmatpush1.bf16.msra.mxu0 %v1754
        %1791 = vmatprep.subr.bf16.mxu0 0
        %1792 = vmatpush1.bf16.msra.mxu0 %v1755
        %1793 = vmatprep.subr.bf16.mxu0 0
        %1794 = vmatpush1.bf16.msra.mxu0 %v1756
        %1795 = vmatprep.subr.bf16.mxu0 0
        %1796 = vmatpush1.bf16.msra.mxu0 %v1757
        %1797 = vmatprep.subr.bf16.mxu0 0
        %1798 = vmatpush1.bf16.msra.mxu0 0
        %1799 = vmatprep.subr.bf16.mxu0 0
        %1800 = vmatpush1.bf16.msra.mxu0 0
        %1801 = vmatprep.subr.bf16.mxu0 0
        %1802 = vmatpush1.bf16.msra.mxu0 0
        %1803 = vmatprep.subr.bf16.mxu0 0
        %1804 = vmatpush1.bf16.msra.mxu0 0
        %1805 = vmatprep.subr.bf16.mxu0 0
        %1806 = vmatpush1.bf16.msra.mxu0 0
        %1807 = vmatprep.subr.bf16.mxu0 0
        %1808 = vmatpush1.bf16.msra.mxu0 0
        %1809 = vmatprep.subr.bf16.mxu0 0
        %1810 = vmatpush1.bf16.msra.mxu0 0
        %1811 = vmatprep.mubr.bf16.mxu0 %v1768
        %1812 = vmatmul.mubr.bf16.gmra.mrb[0].mxu0 %v1680
        %v1813 = vpop.f32.mrb[0].mxu0
        %v1814 = vadd.f32 %v1711, %v1813
        %v1815 = vpop.f32.mrb[0].mxu0
        %v1816 = vpop.f32.mrb[0].mxu0
        %v1817 = vadd.f32 %v1711, %v1816
        %v1818 = vpop.f32.mrb[0].mxu0
        %1819 = vmatprep.mubr.bf16.mxu0 %v1771
        %1820 = vmatmul.mubr.bf16.gmra.mrb[0].mxu0 %v1682
        %v1821 = vpop.f32.mrb[0].mxu0
        %v1822 = vadd.f32 %v1711, %v1821
        %v1823 = vpop.f32.mrb[0].mxu0
        %v1824 = vpop.f32.mrb[0].mxu0
        %v1825 = vadd.f32 %v1711, %v1824
        %v1826 = vpop.f32.mrb[0].mxu0
        %1827 = vmatprep.mubr.bf16.mxu0 %v1774
        %1828 = vmatmul.mubr.bf16.gmra.mrb[0].mxu0 %v1684
        %v1829 = vpop.f32.mrb[0].mxu0
        %v1830 = vadd.f32 %v1711, %v1829
        %v1831 = vpop.f32.mrb[0].mxu0
        %v1832 = vpop.f32.mrb[0].mxu0
        %v1833 = vadd.f32 %v1711, %v1832
        %v1834 = vpop.f32.mrb[0].mxu0
        %1835 = vmatprep.mubr.bf16.mxu0 %v1777
        %1836 = vmatmul.mubr.bf16.gmra.mrb[0].mxu0 %v1686
        %v1837 = vpop.f32.mrb[0].mxu0
        %v1838 = vadd.f32 %v1711, %v1837
        %v1839 = vpop.f32.mrb[0].mxu0
        %v1840 = vpop.f32.mrb[0].mxu0
        %v1841 = vadd.f32 %v1711, %v1840
        %v1842 = vpop.f32.mrb[0].mxu0
        %1843 = vdwg.mxu0
        %v1844 = vmax.f32 %v1814, 0.0
        %v1845 = vmax.f32 %v1817, 0.0
        %v1846 = vmax.f32 %v1822, 0.0
        %v1847 = vmax.f32 %v1825, 0.0
        %v1848 = vmax.f32 %v1830, 0.0
        %v1849 = vmax.f32 %v1833, 0.0
        %v1850 = vmax.f32 %v1838, 0.0
        %v1851 = vmax.f32 %v1841, 0.0
        %1852 = vst.msk [vmem:[%s339 + $0x1] sm:$0xff] %vm332, %v1844
        %1853 = vst.msk [vmem:[%s339 + $0x11] sm:$0xff] %vm332, %v1845
        %1854 = vst.msk [vmem:[%s339 + $0x21] sm:$0xff] %vm332, %v1846
        %1855 = vst.msk [vmem:[%s339 + $0x31] sm:$0xff] %vm332, %v1847
        %1856 = vst.msk [vmem:[%s339 + $0x41] sm:$0xff] %vm332, %v1848
        %1857 = vst.msk [vmem:[%s339 + $0x51] sm:$0xff] %vm332, %v1849
        %1858 = vst.msk [vmem:[%s339 + $0x61] sm:$0xff] %vm332, %v1850
        %1859 = vst.msk [vmem:[%s339 + $0x71] sm:$0xff] %vm332, %v1851
        %v1860 = vld [vmem:[#allocation2] sm:$0xff]
        %v1861 = vld [vmem:[#allocation2 + $0x10] sm:$0xff]
        %v1862 = vld [vmem:[#allocation2 + $0x20] sm:$0xff]
        %v1863 = vld [vmem:[#allocation2 + $0x30] sm:$0xff]
        %v1864 = vld [vmem:[#allocation2 + $0x40] sm:$0xff]
        %v1865 = vld [vmem:[#allocation2 + $0x50] sm:$0xff]
        %v1866 = vld [vmem:[#allocation2 + $0x60] sm:$0xff]
        %v1867 = vld [vmem:[#allocation2 + $0x70] sm:$0xff]
        %v1868 = vld [vmem:[#allocation2 + $0x1] sm:$0xff]
        %v1869 = vld [vmem:[#allocation2 + $0x11] sm:$0xff]
        %v1870 = vld [vmem:[#allocation2 + $0x21] sm:$0xff]
        %v1871 = vld [vmem:[#allocation2 + $0x31] sm:$0xff]
        %v1872 = vld [vmem:[#allocation2 + $0x41] sm:$0xff]
        %v1873 = vld [vmem:[#allocation2 + $0x51] sm:$0xff]
        %v1874 = vld [vmem:[#allocation2 + $0x61] sm:$0xff]
        %v1875 = vld [vmem:[#allocation2 + $0x71] sm:$0xff]
        %v1876 = vld [vmem:[#allocation2 + $0x2] sm:$0xff]
        %v1877 = vld [vmem:[#allocation2 + $0x12] sm:$0xff]
        %v1878 = vld [vmem:[#allocation2 + $0x22] sm:$0xff]
        %v1879 = vld [vmem:[#allocation2 + $0x32] sm:$0xff]
        %v1880 = vld [vmem:[#allocation2 + $0x42] sm:$0xff]
        %v1881 = vld [vmem:[#allocation2 + $0x52] sm:$0xff]
        %v1882 = vld [vmem:[#allocation2 + $0x62] sm:$0xff]
        %v1883 = vld [vmem:[#allocation2 + $0x72] sm:$0xff]
        %v1884 = vld [vmem:[%s339] sm:$0xff]
        %v1885 = vld [vmem:[%s339 + $0x10] sm:$0xff]
        %v1886 = vld [vmem:[%s339 + $0x20] sm:$0xff]
        %v1887 = vld [vmem:[%s339 + $0x30] sm:$0xff]
        %v1888 = vld [vmem:[%s339 + $0x40] sm:$0xff]
        %v1889 = vld [vmem:[%s339 + $0x50] sm:$0xff]
        %v1890 = vld [vmem:[%s339 + $0x60] sm:$0xff]
        %v1891 = vld [vmem:[%s339 + $0x70] sm:$0xff]
        %v1892 = vld [vmem:[%s339 + $0x1] sm:$0xff]
        %v1893 = vld [vmem:[%s339 + $0x11] sm:$0xff]
        %v1894 = vld [vmem:[%s339 + $0x21] sm:$0xff]
        %v1895 = vld [vmem:[%s339 + $0x31] sm:$0xff]
        %v1896 = vld [vmem:[%s339 + $0x41] sm:$0xff]
        %v1897 = vld [vmem:[%s339 + $0x51] sm:$0xff]
        %v1898 = vld [vmem:[%s339 + $0x61] sm:$0xff]
        %v1899 = vld [vmem:[%s339 + $0x71] sm:$0xff]
        %v1900 = vld [vmem:[%s339 + $0x2] sm:$0xff]
        %v1901 = vld [vmem:[%s339 + $0x12] sm:$0xff]
        %v1902 = vld [vmem:[%s339 + $0x22] sm:$0xff]
        %v1903 = vld [vmem:[%s339 + $0x32] sm:$0xff]
        %v1904 = vld [vmem:[%s339 + $0x42] sm:$0xff]
        %v1905 = vld [vmem:[%s339 + $0x52] sm:$0xff]
        %v1906 = vld [vmem:[%s339 + $0x62] sm:$0xff]
        %v1907 = vld [vmem:[%s339 + $0x72] sm:$0xff]
        %v1908 = vld [vmem:[%s831] sm:$0xff]
        %v1909 = vld [vmem:[%s831 + $0x10] sm:$0xff]
        %v1910 = vld [vmem:[%s831 + $0x20] sm:$0xff]
        %v1911 = vld [vmem:[%s831 + $0x30] sm:$0xff]
        %v1912 = vld [vmem:[%s831 + $0x40] sm:$0xff]
        %v1913 = vld [vmem:[%s831 + $0x50] sm:$0xff]
        %v1914 = vld [vmem:[%s831 + $0x60] sm:$0xff]
        %v1915 = vld [vmem:[%s831 + $0x70] sm:$0xff]
        %v1916 = vld [vmem:[%s831 + $0x1] sm:$0xff]
        %v1917 = vld [vmem:[%s831 + $0x11] sm:$0xff]
        %v1918 = vld [vmem:[%s831 + $0x21] sm:$0xff]
        %v1919 = vld [vmem:[%s831 + $0x31] sm:$0xff]
        %v1920 = vld [vmem:[%s831 + $0x41] sm:$0xff]
        %v1921 = vld [vmem:[%s831 + $0x51] sm:$0xff]
        %v1922 = vld [vmem:[%s831 + $0x61] sm:$0xff]
        %v1923 = vld [vmem:[%s831 + $0x71] sm:$0xff]
        %v1924 = vld [vmem:[%s831 + $0x2] sm:$0xff]
        %v1925 = vld [vmem:[%s831 + $0x12] sm:$0xff]
        %v1926 = vld [vmem:[%s831 + $0x22] sm:$0xff]
        %v1927 = vld [vmem:[%s831 + $0x32] sm:$0xff]
        %v1928 = vld [vmem:[%s831 + $0x42] sm:$0xff]
        %v1929 = vld [vmem:[%s831 + $0x52] sm:$0xff]
        %v1930 = vld [vmem:[%s831 + $0x62] sm:$0xff]
        %v1931 = vld [vmem:[%s831 + $0x72] sm:$0xff]
        %1940 = vrot.lane.b32.xlu0 %v1868, 8
        %v1941 = vpop.permute.xlu0 %1940
        %1942 = vrot.lane.b32.xlu0 %v1869, 8
        %v1943 = vpop.permute.xlu0 %1942
        %1944 = vrot.lane.b32.xlu0 %v1870, 8
        %v1945 = vpop.permute.xlu0 %1944
        %1946 = vrot.lane.b32.xlu0 %v1871, 8
        %v1947 = vpop.permute.xlu0 %1946
        %1948 = vrot.lane.b32.xlu0 %v1872, 8
        %v1949 = vpop.permute.xlu0 %1948
        %1950 = vrot.lane.b32.xlu0 %v1873, 8
        %v1951 = vpop.permute.xlu0 %1950
        %1952 = vrot.lane.b32.xlu0 %v1874, 8
        %v1953 = vpop.permute.xlu0 %1952
        %1954 = vrot.lane.b32.xlu0 %v1875, 8
        %v1955 = vpop.permute.xlu0 %1954
        %1972 = vrot.lane.b32.xlu0 %v1876, 16
        %v1973 = vpop.permute.xlu0 %1972
        %1974 = vrot.lane.b32.xlu0 %v1877, 16
        %v1975 = vpop.permute.xlu0 %1974
        %1976 = vrot.lane.b32.xlu0 %v1878, 16
        %v1977 = vpop.permute.xlu0 %1976
        %1978 = vrot.lane.b32.xlu0 %v1879, 16
        %v1979 = vpop.permute.xlu0 %1978
        %1980 = vrot.lane.b32.xlu0 %v1880, 16
        %v1981 = vpop.permute.xlu0 %1980
        %1982 = vrot.lane.b32.xlu0 %v1881, 16
        %v1983 = vpop.permute.xlu0 %1982
        %1984 = vrot.lane.b32.xlu0 %v1882, 16
        %v1985 = vpop.permute.xlu0 %1984
        %1986 = vrot.lane.b32.xlu0 %v1883, 16
        %v1987 = vpop.permute.xlu0 %1986
        %2004 = vrot.lane.b32.xlu0 %v1884, 24
        %v2005 = vpop.permute.xlu0 %2004
        %2006 = vrot.lane.b32.xlu0 %v1885, 24
        %v2007 = vpop.permute.xlu0 %2006
        %2008 = vrot.lane.b32.xlu0 %v1886, 24
        %v2009 = vpop.permute.xlu0 %2008
        %2010 = vrot.lane.b32.xlu0 %v1887, 24
        %v2011 = vpop.permute.xlu0 %2010
        %2012 = vrot.lane.b32.xlu0 %v1888, 24
        %v2013 = vpop.permute.xlu0 %2012
        %2014 = vrot.lane.b32.xlu0 %v1889, 24
        %v2015 = vpop.permute.xlu0 %2014
        %2016 = vrot.lane.b32.xlu0 %v1890, 24
        %v2017 = vpop.permute.xlu0 %2016
        %2018 = vrot.lane.b32.xlu0 %v1891, 24
        %v2019 = vpop.permute.xlu0 %2018
        %2036 = vrot.lane.b32.xlu0 %v1892, 32
        %v2037 = vpop.permute.xlu0 %2036
        %2038 = vrot.lane.b32.xlu0 %v1893, 32
        %v2039 = vpop.permute.xlu0 %2038
        %2040 = vrot.lane.b32.xlu0 %v1894, 32
        %v2041 = vpop.permute.xlu0 %2040
        %2042 = vrot.lane.b32.xlu0 %v1895, 32
        %v2043 = vpop.permute.xlu0 %2042
        %2044 = vrot.lane.b32.xlu0 %v1896, 32
        %v2045 = vpop.permute.xlu0 %2044
        %2046 = vrot.lane.b32.xlu0 %v1897, 32
        %v2047 = vpop.permute.xlu0 %2046
        %2048 = vrot.lane.b32.xlu0 %v1898, 32
        %v2049 = vpop.permute.xlu0 %2048
        %2050 = vrot.lane.b32.xlu0 %v1899, 32
        %v2051 = vpop.permute.xlu0 %2050
        %2068 = vrot.lane.b32.xlu0 %v1900, 40
        %v2069 = vpop.permute.xlu0 %2068
        %2070 = vrot.lane.b32.xlu0 %v1901, 40
        %v2071 = vpop.permute.xlu0 %2070
        %2072 = vrot.lane.b32.xlu0 %v1902, 40
        %v2073 = vpop.permute.xlu0 %2072
        %2074 = vrot.lane.b32.xlu0 %v1903, 40
        %v2075 = vpop.permute.xlu0 %2074
        %2076 = vrot.lane.b32.xlu0 %v1904, 40
        %v2077 = vpop.permute.xlu0 %2076
        %2078 = vrot.lane.b32.xlu0 %v1905, 40
        %v2079 = vpop.permute.xlu0 %2078
        %2080 = vrot.lane.b32.xlu0 %v1906, 40
        %v2081 = vpop.permute.xlu0 %2080
        %2082 = vrot.lane.b32.xlu0 %v1907, 40
        %v2083 = vpop.permute.xlu0 %2082
        %2100 = vrot.lane.b32.xlu0 %v1908, 48
        %v2101 = vpop.permute.xlu0 %2100
        %2102 = vrot.lane.b32.xlu0 %v1909, 48
        %v2103 = vpop.permute.xlu0 %2102
        %2104 = vrot.lane.b32.xlu0 %v1910, 48
        %v2105 = vpop.permute.xlu0 %2104
        %2106 = vrot.lane.b32.xlu0 %v1911, 48
        %v2107 = vpop.permute.xlu0 %2106
        %2108 = vrot.lane.b32.xlu0 %v1912, 48
        %v2109 = vpop.permute.xlu0 %2108
        %2110 = vrot.lane.b32.xlu0 %v1913, 48
        %v2111 = vpop.permute.xlu0 %2110
        %2112 = vrot.lane.b32.xlu0 %v1914, 48
        %v2113 = vpop.permute.xlu0 %2112
        %2114 = vrot.lane.b32.xlu0 %v1915, 48
        %v2115 = vpop.permute.xlu0 %2114
        %2132 = vrot.lane.b32.xlu0 %v1916, 56
        %v2133 = vpop.permute.xlu0 %2132
        %2134 = vrot.lane.b32.xlu0 %v1917, 56
        %v2135 = vpop.permute.xlu0 %2134
        %2136 = vrot.lane.b32.xlu0 %v1918, 56
        %v2137 = vpop.permute.xlu0 %2136
        %2138 = vrot.lane.b32.xlu0 %v1919, 56
        %v2139 = vpop.permute.xlu0 %2138
        %2140 = vrot.lane.b32.xlu0 %v1920, 56
        %v2141 = vpop.permute.xlu0 %2140
        %2142 = vrot.lane.b32.xlu0 %v1921, 56
        %v2143 = vpop.permute.xlu0 %2142
        %2144 = vrot.lane.b32.xlu0 %v1922, 56
        %v2145 = vpop.permute.xlu0 %2144
        %2146 = vrot.lane.b32.xlu0 %v1923, 56
        %v2147 = vpop.permute.xlu0 %2146
        %2164 = vrot.lane.b32.xlu0 %v1924, 64
        %v2165 = vpop.permute.xlu0 %2164
        %2166 = vrot.lane.b32.xlu0 %v1925, 64
        %v2167 = vpop.permute.xlu0 %2166
        %2168 = vrot.lane.b32.xlu0 %v1926, 64
        %v2169 = vpop.permute.xlu0 %2168
        %2170 = vrot.lane.b32.xlu0 %v1927, 64
        %v2171 = vpop.permute.xlu0 %2170
        %2172 = vrot.lane.b32.xlu0 %v1928, 64
        %v2173 = vpop.permute.xlu0 %2172
        %2174 = vrot.lane.b32.xlu0 %v1929, 64
        %v2175 = vpop.permute.xlu0 %2174
        %2176 = vrot.lane.b32.xlu0 %v1930, 64
        %v2177 = vpop.permute.xlu0 %2176
        %2178 = vrot.lane.b32.xlu0 %v1931, 64
        %v2179 = vpop.permute.xlu0 %2178
        %v2188 = vsel %vm332, %v1860, %v1941
        %v2189 = vsel %vm332, %v1861, %v1943
        %v2190 = vsel %vm332, %v1862, %v1945
        %v2191 = vsel %vm332, %v1863, %v1947
        %v2192 = vsel %vm332, %v1864, %v1949
        %v2193 = vsel %vm332, %v1865, %v1951
        %v2194 = vsel %vm332, %v1866, %v1953
        %v2195 = vsel %vm332, %v1867, %v1955
        %v2196 = vsel %vm357, %v2188, %v1973
        %v2197 = vsel %vm357, %v2189, %v1975
        %v2198 = vsel %vm357, %v2190, %v1977
        %v2199 = vsel %vm357, %v2191, %v1979
        %v2200 = vsel %vm357, %v2192, %v1981
        %v2201 = vsel %vm357, %v2193, %v1983
        %v2202 = vsel %vm357, %v2194, %v1985
        %v2203 = vsel %vm357, %v2195, %v1987
        %v2204 = vsel %vm1128, %v2196, %v2005
        %v2205 = vsel %vm1128, %v2197, %v2007
        %v2206 = vsel %vm1128, %v2198, %v2009
        %v2207 = vsel %vm1128, %v2199, %v2011
        %v2208 = vsel %vm1128, %v2200, %v2013
        %v2209 = vsel %vm1128, %v2201, %v2015
        %v2210 = vsel %vm1128, %v2202, %v2017
        %v2211 = vsel %vm1128, %v2203, %v2019
        %v2212 = vsel %vm596, %v2204, %v2037
        %v2213 = vsel %vm596, %v2205, %v2039
        %v2214 = vsel %vm596, %v2206, %v2041
        %v2215 = vsel %vm596, %v2207, %v2043
        %v2216 = vsel %vm596, %v2208, %v2045
        %v2217 = vsel %vm596, %v2209, %v2047
        %v2218 = vsel %vm596, %v2210, %v2049
        %v2219 = vsel %vm596, %v2211, %v2051
        %v2220 = vsel %vm1145, %v2212, %v2069
        %v2221 = vsel %vm1145, %v2213, %v2071
        %v2222 = vsel %vm1145, %v2214, %v2073
        %v2223 = vsel %vm1145, %v2215, %v2075
        %v2224 = vsel %vm1145, %v2216, %v2077
        %v2225 = vsel %vm1145, %v2217, %v2079
        %v2226 = vsel %vm1145, %v2218, %v2081
        %v2227 = vsel %vm1145, %v2219, %v2083
        %v2228 = vsel %vm1154, %v2220, %v2101
        %v2229 = vsel %vm1154, %v2221, %v2103
        %v2230 = vsel %vm1154, %v2222, %v2105
        %v2231 = vsel %vm1154, %v2223, %v2107
        %v2232 = vsel %vm1154, %v2224, %v2109
        %v2233 = vsel %vm1154, %v2225, %v2111
        %v2234 = vsel %vm1154, %v2226, %v2113
        %v2235 = vsel %vm1154, %v2227, %v2115
        %v2236 = vsel %vm1163, %v2228, %v2133
        %v2237 = vsel %vm1163, %v2229, %v2135
        %v2238 = vsel %vm1163, %v2230, %v2137
        %v2239 = vsel %vm1163, %v2231, %v2139
        %v2240 = vsel %vm1163, %v2232, %v2141
        %v2241 = vsel %vm1163, %v2233, %v2143
        %v2242 = vsel %vm1163, %v2234, %v2145
        %v2243 = vsel %vm1163, %v2235, %v2147
        %v2244 = vsel %vm609, %v2236, %v2165
        %v2245 = vsel %vm609, %v2237, %v2167
        %v2246 = vsel %vm609, %v2238, %v2169
        %v2247 = vsel %vm609, %v2239, %v2171
        %v2248 = vsel %vm609, %v2240, %v2173
        %v2249 = vsel %vm609, %v2241, %v2175
        %v2250 = vsel %vm609, %v2242, %v2177
        %v2251 = vsel %vm609, %v2243, %v2179
        %v2252 = vpack.c.bf16 %v2245, %v2244
        %v2253 = vpack.c.bf16 %v2247, %v2246
        %v2254 = vpack.c.bf16 %v2249, %v2248
        %v2255 = vpack.c.bf16 %v2251, %v2250
        %v2256 = vld [vmem:[%s7] sm:$0xf]
        %v2257 = vld [vmem:[%s7 + $0x4] sm:$0xf]
        %v2258 = vld [vmem:[%s7 + $0x8] sm:$0xf]
        %v2259 = vld [vmem:[%s7 + $0xc] sm:$0xf]
        %v2260 = vld [vmem:[%s7 + $0x10] sm:$0xf]
        %v2261 = vld [vmem:[%s7 + $0x14] sm:$0xf]
        %v2262 = vld [vmem:[%s7 + $0x18] sm:$0xf]
        %v2263 = vld [vmem:[%s7 + $0x1c] sm:$0xf]
        %v2264 = vld [vmem:[%s7 + $0x20] sm:$0xf]
        %v2265 = vld [vmem:[%s8] sm:$0x1]
        %v2267 = vlaneseq
        %v2268 = vshrl.u32 %v2267, 7
        %v2269 = vsub.s32 0, %v2268
        %v2270 = vrot.slane %v2265, %v2269
        %v2281 = vunpack.c.l.b16 %v2256
        %v2282 = vunpack.c.l.b16 %v2257
        %v2283 = vunpack.c.l.b16 %v2258
        %v2284 = vunpack.c.l.b16 %v2259
        %v2285 = vunpack.c.l.b16 %v2260
        %v2286 = vunpack.c.l.b16 %v2261
        %v2287 = vunpack.c.l.b16 %v2262
        %v2288 = vunpack.c.l.b16 %v2263
        %v2289 = vunpack.c.l.b16 %v2264
        %v2290 = vpack.c.b16 %v2282, %v2281
        %v2291 = vpack.c.b16 %v2284, %v2283
        %v2292 = vpack.c.b16 %v2286, %v2285
        %v2293 = vpack.c.b16 %v2288, %v2287
        %v2294 = vpack.c.b16 %v2289, %v2289
        %v2300 = vsel %vm1227, %v2252, 0
        %v2303 = vsel %vm1227, %v2253, 0
        %v2306 = vsel %vm1227, %v2254, 0
        %v2309 = vsel %vm1227, %v2255, 0
        %v2312 = vsel %vm1240, %v2294, 0
        %2314 = vmatprep.subr.bf16.mxu0 0
        %2315 = vmatpush1.bf16.msra.mxu0 %v2290
        %2316 = vmatprep.subr.bf16.mxu0 0
        %2317 = vmatpush1.bf16.msra.mxu0 %v2291
        %2318 = vmatprep.subr.bf16.mxu0 0
        %2319 = vmatpush1.bf16.msra.mxu0 %v2292
        %2320 = vmatprep.subr.bf16.mxu0 0
        %2321 = vmatpush1.bf16.msra.mxu0 %v2293
        %2322 = vmatprep.subr.bf16.mxu0 0
        %2323 = vmatpush1.bf16.msra.mxu0 %v2312
        %2324 = vmatprep.subr.bf16.mxu0 0
        %2325 = vmatpush1.bf16.msra.mxu0 0
        %2326 = vmatprep.subr.bf16.mxu0 0
        %2327 = vmatpush1.bf16.msra.mxu0 0
        %2328 = vmatprep.subr.bf16.mxu0 0
        %2329 = vmatpush1.bf16.msra.mxu0 0
        %2330 = vmatprep.subr.bf16.mxu0 0
        %2331 = vmatpush1.bf16.msra.mxu0 0
        %2332 = vmatprep.subr.bf16.mxu0 0
        %2333 = vmatpush1.bf16.msra.mxu0 0
        %2334 = vmatprep.subr.bf16.mxu0 0
        %2335 = vmatpush1.bf16.msra.mxu0 0
        %2336 = vmatprep.subr.bf16.mxu0 0
        %2337 = vmatpush1.bf16.msra.mxu0 0
        %2338 = vmatprep.subr.bf16.mxu0 0
        %2339 = vmatpush1.bf16.msra.mxu0 0
        %2340 = vmatprep.subr.bf16.mxu0 0
        %2341 = vmatpush1.bf16.msra.mxu0 0
        %2342 = vmatprep.subr.bf16.mxu0 0
        %2343 = vmatpush1.bf16.msra.mxu0 0
        %2344 = vmatprep.subr.bf16.mxu0 0
        %2345 = vmatpush1.bf16.msra.mxu0 0
        %2346 = vmatprep.mubr.bf16.mxu0 0
        %2347 = vmatmul.mubr.bf16.gmra.mrb[0].mxu0 %v2300
        %v2348 = vpop.f32.mrb[0].mxu0
        %v2349 = vadd.f32 %v2270, %v2348
        %v2350 = vpop.f32.mrb[0].mxu0
        %v2351 = vpop.f32.mrb[0].mxu0
        %v2352 = vadd.f32 %v2270, %v2351
        %v2353 = vpop.f32.mrb[0].mxu0
        %2354 = vmatprep.mubr.bf16.mxu0 0
        %2355 = vmatmul.mubr.bf16.gmra.mrb[0].mxu0 %v2303
        %v2356 = vpop.f32.mrb[0].mxu0
        %v2357 = vadd.f32 %v2270, %v2356
        %v2358 = vpop.f32.mrb[0].mxu0
        %v2359 = vpop.f32.mrb[0].mxu0
        %v2360 = vadd.f32 %v2270, %v2359
        %v2361 = vpop.f32.mrb[0].mxu0
        %2362 = vmatprep.mubr.bf16.mxu0 0
        %2363 = vmatmul.mubr.bf16.gmra.mrb[0].mxu0 %v2306
        %v2364 = vpop.f32.mrb[0].mxu0
        %v2365 = vadd.f32 %v2270, %v2364
        %v2366 = vpop.f32.mrb[0].mxu0
        %v2367 = vpop.f32.mrb[0].mxu0
        %v2368 = vadd.f32 %v2270, %v2367
        %v2369 = vpop.f32.mrb[0].mxu0
        %2370 = vmatprep.mubr.bf16.mxu0 0
        %2371 = vmatmul.mubr.bf16.gmra.mrb[0].mxu0 %v2309
        %v2372 = vpop.f32.mrb[0].mxu0
        %v2373 = vadd.f32 %v2270, %v2372
        %v2374 = vpop.f32.mrb[0].mxu0
        %v2375 = vpop.f32.mrb[0].mxu0
        %v2376 = vadd.f32 %v2270, %v2375
        %v2377 = vpop.f32.mrb[0].mxu0
        %2378 = vdwg.mxu0
        %v2379 = vmax.f32 %v2349, 0.0
        %v2380 = vmax.f32 %v2352, 0.0
        %v2381 = vmax.f32 %v2357, 0.0
        %v2382 = vmax.f32 %v2360, 0.0
        %v2383 = vmax.f32 %v2365, 0.0
        %v2384 = vmax.f32 %v2368, 0.0
        %v2385 = vmax.f32 %v2373, 0.0
        %v2386 = vmax.f32 %v2376, 0.0
        %2387 = vst.msk [vmem:[%s325] sm:$0xff] %vm357, %v2379
        %2388 = vst.msk [vmem:[%s325 + $0x8] sm:$0xff] %vm357, %v2380
        %2389 = vst.msk [vmem:[%s325 + $0x10] sm:$0xff] %vm357, %v2381
        %2390 = vst.msk [vmem:[%s325 + $0x18] sm:$0xff] %vm357, %v2382
        %2391 = vst.msk [vmem:[%s325 + $0x20] sm:$0xff] %vm357, %v2383
        %2392 = vst.msk [vmem:[%s325 + $0x28] sm:$0xff] %vm357, %v2384
        %2393 = vst.msk [vmem:[%s325 + $0x30] sm:$0xff] %vm357, %v2385
        %2394 = vst.msk [vmem:[%s325 + $0x38] sm:$0xff] %vm357, %v2386
        %s2395 = sand.u32 %s225, 1
        %s2396 = scalar_lea.sflag [#allocation5], %s2395
        %s2397 = sand.u32 %s225, 1
        %s2398 = smul.addr %s2397, 64
        %s2399 = scalar_lea.vmem [#allocation4], %s2398
        // Predicated region
        $region57: #{_lambda_.1} parent=55 // pred_check
          %p2400 = pneg %p235
        $region58: #{_lambda_.1} parent=55 // pred_check_branch
          %2402 = sbr.rel (%p2400) target = $region60
        $region59: #{_lambda_.1} parent=55 // pred_region
          %s2404 = ssub.s32 1024, 1024
          %2405 = vsyncadd %s2396, %s2404
          %s2406 = smul.addr %s23, 8
          %s2407 = smul.addr %s2406, 128
          %s2408 = scalar_lea.hbm %s9, %s2407
          %s2409 = sshll.u32 %s2399, 4
          %s2410 = int_to_ptr.vmem [resolvable:$true] %s2409
          %2415 = dma.vmem_to_hbm [thread:$0]  %s2410, 1024, %s2408, %s2396, 128, 128, 8
        $region60: #{_lambda_.1} parent=55 // pred_fallthru
          _
      $region56: #{_lambda_.1} parent=5 // pred_fallthru
        _
      %p2416 = scmp.le.s32.totalorder 2, %s18
      // Predicated region
      $region61: #{_lambda_.1} parent=5 // pred_check
        %p2417 = pneg %p2416
      $region62: #{_lambda_.1} parent=5 // pred_check_branch
        %2419 = sbr.rel (%p2417) target = $region64
      $region63: #{_lambda_.1} parent=5 // pred_region
        %s2420 = ssub.s32 %s18, 2
        // Predicated region
        $region65: #{_lambda_.1} parent=63 // pred_check
          %p2421 = pneg %p241
        $region66: #{_lambda_.1} parent=63 // pred_check_branch
          %2423 = sbr.rel (%p2421) target = $region68
        $region67: #{_lambda_.1} parent=63 // pred_region
          %s2424 = sand.u32 %s226, 1
          %s2425 = scalar_lea.sflag [#allocation5], %s2424
          %s2426 = sand.u32 %s226, 1
          %s2427 = smul.addr %s2426, 64
          %s2428 = scalar_lea.vmem [#allocation4], %s2427
          %2429 = dma.done %s2425, 1024
        $region68: #{_lambda_.1} parent=63 // pred_fallthru
          _
      $region64: #{_lambda_.1} parent=5 // pred_fallthru
        _
    $region6: #{_lambda_.1} parent=1 // loop_footer
      %s22 = sadd.s32 1, %s18
    $region7: #{_lambda_.1} parent=1 // loop_footer_branch
      %17 = sbr.rel target = $region3
    $region8: #{_lambda_.1} parent=1 // loop_exit
      _
    %2430 = vsyncpa [#allocation5], 1
    %s2431 = scalar_lea.sflag [#allocation5], 1
    %2432 = vsyncpa %s2431, 1

</llo_original>
